<compile_context>
chip_gen: v7x
topology: tpu7x:2x2x1
jax: 0.10.0
libtpu: 0.0.40
codegen_flags: <defaults>
</compile_context>

<pallas_src>
import functools
import math

import numpy as np
import jax
import jax.numpy as jnp
from jax import lax
from jax.experimental import pallas as pl
from jax.experimental.pallas import tpu as pltpu


def _attention_kernel(x_ref, cos_ref, sin_ref, mask_ref,
                      wq_ref, wkv_ref, wproj_ref, bproj_ref,
                      o_ref, k_scr, v_scr,
                      *, num_heads, head_dim, tq):
    D = num_heads * head_dim
    qi = pl.program_id(1)

    # ---- once per batch element: K / V projection + K RoPE for the full sequence
    @pl.when(qi == 0)
    def _():
        cos_all = cos_ref[0]                                        # (S, hd) f32
        sin_all = sin_ref[0]
        cos_D = jnp.concatenate([cos_all] * num_heads, axis=-1)     # (S, D)
        sin_D = jnp.concatenate([sin_all] * num_heads, axis=-1)
        xf = x_ref[0]                                               # (S, D) bf16
        kv = jnp.dot(xf, wkv_ref[...],                              # (S, 3D), f32 acc
                     preferred_element_type=jnp.float32)
        k = kv[:, :D]
        k_rot = kv[:, D:2 * D]
        k_scr[...] = (k * cos_D + k_rot * sin_D).astype(jnp.bfloat16)
        v_scr[...] = kv[:, 2 * D:].astype(jnp.bfloat16)

    # ---- per query tile: fused [q | q@rot] projection (scale folded into weights)
    start = pl.multiple_of(qi * tq, tq)
    xq = x_ref[0, pl.ds(start, tq), :]                              # (tq, D) bf16
    qq = jnp.dot(xq, wq_ref[...],                                   # (tq, 2D), f32 acc
                 preferred_element_type=jnp.float32)
    q = qq[:, :D]
    q_rot = qq[:, D:]

    cos_t = cos_ref[0, pl.ds(start, tq), :]                         # (tq, hd) f32
    sin_t = sin_ref[0, pl.ds(start, tq), :]
    cos_tD = jnp.concatenate([cos_t] * num_heads, axis=-1)          # (tq, D)
    sin_tD = jnp.concatenate([sin_t] * num_heads, axis=-1)
    q_roped = (q * cos_tD + q_rot * sin_tD).astype(jnp.bfloat16)    # (tq, D)

    mask = mask_ref[0].astype(jnp.float32)                          # (tq, S)
    wp = wproj_ref[...]                                             # (D, D) bf16
    k_all = k_scr[...]                                              # (S, D) bf16
    v_all = v_scr[...]                                              # (S, D) bf16

    acc = jnp.zeros((tq, D), jnp.float32)
    for h in range(num_heads):                                      # static unrolled
        sl = slice(h * head_dim, (h + 1) * head_dim)
        qh = q_roped[:, sl]                                         # (tq, hd)
        kh = k_all[:, sl]                                           # (S, hd)
        vh = v_all[:, sl]                                           # (S, hd)
        # scores: contract last dims of q/k (no explicit transpose)
        s = lax.dot_general(qh, kh, (((1,), (1,)), ((), ())),
                            preferred_element_type=jnp.float32)     # (tq, S)
        s = s + mask
        s = s - jnp.max(s, axis=-1, keepdims=True)
        p = jnp.exp(s)                                              # f32 softmax math
        inv_l = pl.reciprocal(jnp.sum(p, axis=-1, keepdims=True), approx=True)
        attn_h = jnp.dot(p.astype(jnp.bfloat16), vh,
                         preferred_element_type=jnp.float32) * inv_l  # (tq, hd)
        # fold the output projection in per head -> full-width lane-dense output
        acc = acc + jnp.dot(attn_h.astype(jnp.bfloat16), wp[sl, :],
                            preferred_element_type=jnp.float32)
    o_ref[0] = acc + bproj_ref[...]


def attention_forward(x, freqs_cis, mask, params, num_heads, tq=None):
    """x: (B,S,D) f32; freqs_cis: (B,S,head_dim) = [cos | sin]; mask: (B,S,S) additive."""
    B, S, D = x.shape
    assert D % num_heads == 0
    hd = D // num_heads
    assert hd % 2 == 0
    wq, wkv, wproj, bproj = params

    # compact per-pair cos/sin, repeated per interleaved pair: (B, S, hd)
    cos = freqs_cis[..., : hd // 2]
    sin = freqs_cis[..., hd // 2:]
    cos_rep = jnp.repeat(cos, 2, axis=-1).astype(jnp.float32)
    sin_rep = jnp.repeat(sin, 2, axis=-1).astype(jnp.float32)

    # interleaved-pair rotation matrix, folded into the projection weights (glue)
    rot_small = np.zeros((hd, hd), np.float32)
    for i in range(hd // 2):
        rot_small[2 * i, 2 * i + 1] = 1.0      # even -> odd slot
        rot_small[2 * i + 1, 2 * i] = -1.0     # odd  -> -even slot
    rot_full = jnp.asarray(np.kron(np.eye(num_heads, dtype=np.float32), rot_small))

    scale = 1.0 / math.sqrt(hd)
    wq_s = wq * scale                                               # fold q scale
    wq_fused = jnp.concatenate([wq_s, wq_s @ rot_full], axis=1).astype(jnp.bfloat16)
    wk = wkv[:, :D]
    wv = wkv[:, D:]
    wkv_fused = jnp.concatenate([wk, wk @ rot_full, wv], axis=1).astype(jnp.bfloat16)
    wproj_bf = wproj.astype(jnp.bfloat16)
    mask_bf = mask.astype(jnp.bfloat16)
    bias2d = bproj.reshape(1, D).astype(jnp.float32)
    x_bf = x.astype(jnp.bfloat16)

    if tq is None:
        tq = S if S <= 256 else (256 if S % 256 == 0 else S)
    assert S % tq == 0

    kernel = functools.partial(_attention_kernel,
                               num_heads=num_heads, head_dim=hd, tq=tq)

    return pl.pallas_call(
        kernel,
        out_shape=jax.ShapeDtypeStruct((B, S, D), jnp.float32),
        grid_spec=pltpu.PrefetchScalarGridSpec(
            num_scalar_prefetch=0,
            grid=(B, S // tq),
            in_specs=[
                pl.BlockSpec((1, S, D), lambda b, q: (b, 0, 0)),    # x (full seq, bf16)
                pl.BlockSpec((1, S, hd), lambda b, q: (b, 0, 0)),   # cos (full seq)
                pl.BlockSpec((1, S, hd), lambda b, q: (b, 0, 0)),   # sin (full seq)
                pl.BlockSpec((1, tq, S), lambda b, q: (b, q, 0)),   # additive mask (bf16)
                pl.BlockSpec((D, 2 * D), lambda b, q: (0, 0)),      # [wq | wq@rot] * scale
                pl.BlockSpec((D, 3 * D), lambda b, q: (0, 0)),      # [wk | wk@rot | wv]
                pl.BlockSpec((D, D), lambda b, q: (0, 0)),          # wproj
                pl.BlockSpec((1, D), lambda b, q: (0, 0)),          # proj bias (f32)
            ],
            out_specs=pl.BlockSpec((1, tq, D), lambda b, q: (b, q, 0)),
            scratch_shapes=[
                pltpu.VMEM((S, D), jnp.bfloat16),   # K (RoPE'd)
                pltpu.VMEM((S, D), jnp.bfloat16),   # V
            ],
        ),
        compiler_params=pltpu.CompilerParams(
            dimension_semantics=("parallel", "arbitrary"),
            vmem_limit_bytes=64 * 1024 * 1024),
    )(x_bf, cos_rep, sin_rep, mask_bf, wq_fused, wkv_fused, wproj_bf, bias2d)
    # TODO(synk): for very long S, switch the inner axis to a flash-style online
    # softmax over KV tiles instead of holding full-sequence K/V in VMEM scratch.


# -------------------- pure-JAX reference (torch semantics, f32) --------------------
def _rope_ref(x, freqs_cis):
    # x: (B, S, H, hd), freqs_cis: (B, S, hd)
    xr = x[..., 0::2]
    xi = x[..., 1::2]
    cos, sin = jnp.split(freqs_cis, 2, axis=-1)        # (B, S, hd//2)
    cos = cos[:, :, None, :]
    sin = sin[:, :, None, :]
    outr = xr * cos - xi * sin
    outi = xr * sin + xi * cos
    return jnp.stack([outr, outi], axis=-1).reshape(x.shape)


def attention_reference(x, freqs_cis, mask, params, num_heads):
    B, S, D = x.shape
    hd = D // num_heads
    wq, wkv, wproj, bproj = params
    q = x @ wq
    kv = x @ wkv
    k, v = kv[..., :D], kv[..., D:]
    q = q.reshape(B, S, num_heads, hd)
    k = k.reshape(B, S, num_heads, hd)
    v = v.reshape(B, S, num_heads, hd)
    q = _rope_ref(q, freqs_cis)
    k = _rope_ref(k, freqs_cis)
    q = q.transpose(0, 2, 1, 3)
    k = k.transpose(0, 2, 1, 3)
    v = v.transpose(0, 2, 1, 3)
    scores = (q @ k.transpose(0, 1, 3, 2)) / math.sqrt(hd) + mask[:, None]
    p = jax.nn.softmax(scores, axis=-1)
    o = p @ v                                   # (B, H, S, hd)
    o = o.transpose(0, 2, 1, 3).reshape(B, S, D)
    return o @ wproj + bproj


# ------------------------------------ main ------------------------------------
if __name__ == "__main__":
    B, S, D, H = 2, 8, 32, 4
    hd = D // H

    key = jax.random.PRNGKey(0)
    kx, kq, kkv, kp, kb, km = jax.random.split(key, 6)

    x = jax.random.normal(kx, (B, S, D), jnp.float32)
    wq = jax.random.normal(kq, (D, D), jnp.float32) / math.sqrt(D)
    wkv = jax.random.normal(kkv, (D, 2 * D), jnp.float32) / math.sqrt(D)
    wproj = jax.random.normal(kp, (D, D), jnp.float32) / math.sqrt(D)
    bproj = jax.random.normal(kb, (D,), jnp.float32) * 0.1
    params = (wq, wkv, wproj, bproj)

    # rotary freqs: (B, S, head_dim) = [cos | sin], same rotation for each batch
    inv_freq = 1.0 / (10000.0 ** (jnp.arange(0, hd // 2, dtype=jnp.float32) * 2.0 / hd))
    angles = jnp.arange(S, dtype=jnp.float32)[:, None] * inv_freq[None, :]  # (S, hd//2)
    freqs_cis = jnp.concatenate([jnp.cos(angles), jnp.sin(angles)], axis=-1)
    freqs_cis = jnp.broadcast_to(freqs_cis[None], (B, S, hd))

    # additive float attention mask (broadcast over heads)
    mask = (jax.random.uniform(km, (B, S, S)) > 0.8).astype(jnp.float32) * (-1e9)

    out = attention_forward(x, freqs_cis, mask, params, H)
    out = jax.block_until_ready(out)

    ref = attention_reference(x, freqs_cis, mask, params, H)
    np.testing.assert_allclose(np.asarray(out), np.asarray(ref),
                               rtol=2e-2, atol=2e-2)
    print("KERNEL_OK")
</pallas_src>

<mosaic_0001>
module attributes {stable_mosaic.version = 11 : i64} {
  func.func @_attention_kernel(%arg0: i32, %arg1: i32, %arg2: memref<1x8x32xbf16, #tpu.memory_space<vmem>>, %arg3: memref<1x8x8xf32, #tpu.memory_space<vmem>>, %arg4: memref<1x8x8xf32, #tpu.memory_space<vmem>>, %arg5: memref<1x8x8xbf16, #tpu.memory_space<vmem>>, %arg6: memref<32x64xbf16, #tpu.memory_space<vmem>>, %arg7: memref<32x96xbf16, #tpu.memory_space<vmem>>, %arg8: memref<32x32xbf16, #tpu.memory_space<vmem>>, %arg9: memref<1x32xf32, #tpu.memory_space<vmem>>, %arg10: memref<1x8x32xf32, #tpu.memory_space<vmem>>, %arg11: memref<8x32xbf16, #tpu.memory_space<vmem>>, %arg12: memref<8x32xbf16, #tpu.memory_space<vmem>>) attributes {dimension_semantics = [#tpu.dimension_semantics<parallel>, #tpu.dimension_semantics<arbitrary>], iteration_bounds = array<i64: 2, 1>, scalar_prefetch = 0 : i64, scratch_operands = 2 : i64, tpu.core_type = #tpu.core_type<tc>, window_params = [{transform_indices = @transform_0, window_bounds = array<i64: 1, 8, 32>}, {transform_indices = @transform_1, window_bounds = array<i64: 1, 8, 8>}, {transform_indices = @transform_2, window_bounds = array<i64: 1, 8, 8>}, {transform_indices = @transform_3, window_bounds = array<i64: 1, 8, 8>}, {pipeline_mode = #tpu.pipeline_mode<synchronous>, transform_indices = @transform_4, window_bounds = array<i64: 32, 64>}, {pipeline_mode = #tpu.pipeline_mode<synchronous>, transform_indices = @transform_5, window_bounds = array<i64: 32, 96>}, {pipeline_mode = #tpu.pipeline_mode<synchronous>, transform_indices = @transform_6, window_bounds = array<i64: 32, 32>}, {pipeline_mode = #tpu.pipeline_mode<synchronous>, transform_indices = @transform_7, window_bounds = array<i64: 1, 32>}, {transform_indices = @transform_8, window_bounds = array<i64: 1, 8, 32>}]} {
    %c0_i32 = arith.constant 0 : i32
    %0 = arith.cmpi eq, %arg1, %c0_i32 : i32
    %1 = arith.extui %0 : i1 to i32
    %c0_i32_0 = arith.constant 0 : i32
    %2 = arith.cmpi ne, %1, %c0_i32_0 : i32
    scf.if %2 {
      %c0_43 = arith.constant 0 : index
      %c0_44 = arith.constant 0 : index
      %c0_45 = arith.constant 0 : index
      %121 = vector.load %arg3[%c0_43, %c0_44, %c0_45] : memref<1x8x8xf32, #tpu.memory_space<vmem>>, vector<1x8x8xf32>
      %122 = vector.shape_cast %121 : vector<1x8x8xf32> to vector<8x8xf32>
      %c0_46 = arith.constant 0 : index
      %c0_47 = arith.constant 0 : index
      %c0_48 = arith.constant 0 : index
      %123 = vector.load %arg4[%c0_46, %c0_47, %c0_48] : memref<1x8x8xf32, #tpu.memory_space<vmem>>, vector<1x8x8xf32>
      %124 = vector.shape_cast %123 : vector<1x8x8xf32> to vector<8x8xf32>
      %125 = tpu.concatenate %122, %122, %122, %122 in 1 : vector<8x8xf32>, vector<8x8xf32>, vector<8x8xf32>, vector<8x8xf32> -> vector<8x32xf32>
      %126 = tpu.concatenate %124, %124, %124, %124 in 1 : vector<8x8xf32>, vector<8x8xf32>, vector<8x8xf32>, vector<8x8xf32> -> vector<8x32xf32>
      %c0_49 = arith.constant 0 : index
      %c0_50 = arith.constant 0 : index
      %c0_51 = arith.constant 0 : index
      %127 = vector.load %arg2[%c0_49, %c0_50, %c0_51] : memref<1x8x32xbf16, #tpu.memory_space<vmem>>, vector<1x8x32xbf16>
      %128 = vector.shape_cast %127 : vector<1x8x32xbf16> to vector<8x32xbf16>
      %c0_52 = arith.constant 0 : index
      %c0_53 = arith.constant 0 : index
      %129 = vector.load %arg7[%c0_52, %c0_53] : memref<32x96xbf16, #tpu.memory_space<vmem>>, vector<32x96xbf16>
      %cst_54 = arith.constant dense<0.000000e+00> : vector<8x96xf32>
      %130 = tpu.matmul %128, %129, %cst_54 {dimension_numbers = #tpu.dot_dimension_numbers<[1], [0], [0], [1], [0, 0, 1, 1], [], []>} : vector<8x32xbf16>, vector<32x96xbf16>, vector<8x96xf32> -> vector<8x96xf32>
      %131 = vector.extract_strided_slice %130 {offsets = [0, 0], sizes = [8, 32], strides = [1, 1]} : vector<8x96xf32> to vector<8x32xf32>
      %132 = vector.extract_strided_slice %130 {offsets = [0, 32], sizes = [8, 32], strides = [1, 1]} : vector<8x96xf32> to vector<8x32xf32>
      %133 = arith.mulf %131, %125 : vector<8x32xf32>
      %134 = arith.mulf %132, %126 : vector<8x32xf32>
      %135 = arith.addf %133, %134 : vector<8x32xf32>
      %136 = arith.truncf %135 : vector<8x32xf32> to vector<8x32xbf16>
      %c0_55 = arith.constant 0 : index
      %c0_56 = arith.constant 0 : index
      %137 = vector.load %arg11[%c0_55, %c0_56] : memref<8x32xbf16, #tpu.memory_space<vmem>>, vector<8x32xbf16>
      tpu.vector_store %arg11[%c0_55, %c0_56], %136 {strides = array<i32>} : memref<8x32xbf16, #tpu.memory_space<vmem>>, vector<8x32xbf16>,
      %138 = vector.extract_strided_slice %130 {offsets = [0, 64], sizes = [8, 32], strides = [1, 1]} : vector<8x96xf32> to vector<8x32xf32>
      %139 = arith.truncf %138 : vector<8x32xf32> to vector<8x32xbf16>
      %c0_57 = arith.constant 0 : index
      %c0_58 = arith.constant 0 : index
      %140 = vector.load %arg12[%c0_57, %c0_58] : memref<8x32xbf16, #tpu.memory_space<vmem>>, vector<8x32xbf16>
      tpu.vector_store %arg12[%c0_57, %c0_58], %139 {strides = array<i32>} : memref<8x32xbf16, #tpu.memory_space<vmem>>, vector<8x32xbf16>,
    } else {
    }
    %c8_i32 = arith.constant 8 : i32
    %3 = arith.muli %arg1, %c8_i32 : i32
    %4 = tpu.assume_multiple %3, 8 : i32
    %c0 = arith.constant 0 : index
    %5 = arith.index_cast %4 : i32 to index
    %c0_1 = arith.constant 0 : index
    %6 = vector.load %arg2[%c0, %5, %c0_1] : memref<1x8x32xbf16, #tpu.memory_space<vmem>>, vector<1x8x32xbf16>
    %7 = vector.shape_cast %6 : vector<1x8x32xbf16> to vector<8x32xbf16>
    %c0_2 = arith.constant 0 : index
    %c0_3 = arith.constant 0 : index
    %8 = vector.load %arg6[%c0_2, %c0_3] : memref<32x64xbf16, #tpu.memory_space<vmem>>, vector<32x64xbf16>
    %cst = arith.constant dense<0.000000e+00> : vector<8x64xf32>
    %9 = tpu.matmul %7, %8, %cst {dimension_numbers = #tpu.dot_dimension_numbers<[1], [0], [0], [1], [0, 0, 1, 1], [], []>} : vector<8x32xbf16>, vector<32x64xbf16>, vector<8x64xf32> -> vector<8x64xf32>
    %10 = vector.extract_strided_slice %9 {offsets = [0, 0], sizes = [8, 32], strides = [1, 1]} : vector<8x64xf32> to vector<8x32xf32>
    %11 = vector.extract_strided_slice %9 {offsets = [0, 32], sizes = [8, 32], strides = [1, 1]} : vector<8x64xf32> to vector<8x32xf32>
    %c0_4 = arith.constant 0 : index
    %12 = arith.index_cast %4 : i32 to index
    %c0_5 = arith.constant 0 : index
    %13 = vector.load %arg3[%c0_4, %12, %c0_5] : memref<1x8x8xf32, #tpu.memory_space<vmem>>, vector<1x8x8xf32>
    %14 = vector.shape_cast %13 : vector<1x8x8xf32> to vector<8x8xf32>
    %c0_6 = arith.constant 0 : index
    %15 = arith.index_cast %4 : i32 to index
    %c0_7 = arith.constant 0 : index
    %16 = vector.load %arg4[%c0_6, %15, %c0_7] : memref<1x8x8xf32, #tpu.memory_space<vmem>>, vector<1x8x8xf32>
    %17 = vector.shape_cast %16 : vector<1x8x8xf32> to vector<8x8xf32>
    %18 = tpu.concatenate %14, %14, %14, %14 in 1 : vector<8x8xf32>, vector<8x8xf32>, vector<8x8xf32>, vector<8x8xf32> -> vector<8x32xf32>
    %19 = tpu.concatenate %17, %17, %17, %17 in 1 : vector<8x8xf32>, vector<8x8xf32>, vector<8x8xf32>, vector<8x8xf32> -> vector<8x32xf32>
    %20 = arith.mulf %10, %18 : vector<8x32xf32>
    %21 = arith.mulf %11, %19 : vector<8x32xf32>
    %22 = arith.addf %20, %21 : vector<8x32xf32>
    %23 = arith.truncf %22 : vector<8x32xf32> to vector<8x32xbf16>
    %c0_8 = arith.constant 0 : index
    %c0_9 = arith.constant 0 : index
    %c0_10 = arith.constant 0 : index
    %24 = vector.load %arg5[%c0_8, %c0_9, %c0_10] : memref<1x8x8xbf16, #tpu.memory_space<vmem>>, vector<1x8x8xbf16>
    %25 = vector.shape_cast %24 : vector<1x8x8xbf16> to vector<8x8xbf16>
    %26 = arith.extf %25 : vector<8x8xbf16> to vector<8x8xf32>
    %c0_11 = arith.constant 0 : index
    %c0_12 = arith.constant 0 : index
    %27 = vector.load %arg8[%c0_11, %c0_12] : memref<32x32xbf16, #tpu.memory_space<vmem>>, vector<32x32xbf16>
    %c0_13 = arith.constant 0 : index
    %c0_14 = arith.constant 0 : index
    %28 = vector.load %arg11[%c0_13, %c0_14] : memref<8x32xbf16, #tpu.memory_space<vmem>>, vector<8x32xbf16>
    %c0_15 = arith.constant 0 : index
    %c0_16 = arith.constant 0 : index
    %29 = vector.load %arg12[%c0_15, %c0_16] : memref<8x32xbf16, #tpu.memory_space<vmem>>, vector<8x32xbf16>
    %cst_17 = arith.constant 0.000000e+00 : f32
    %30 = vector.broadcast %cst_17 : f32 to vector<8x32xf32>
    %31 = vector.extract_strided_slice %23 {offsets = [0, 0], sizes = [8, 8], strides = [1, 1]} : vector<8x32xbf16> to vector<8x8xbf16>
    %32 = vector.extract_strided_slice %28 {offsets = [0, 0], sizes = [8, 8], strides = [1, 1]} : vector<8x32xbf16> to vector<8x8xbf16>
    %33 = vector.extract_strided_slice %29 {offsets = [0, 0], sizes = [8, 8], strides = [1, 1]} : vector<8x32xbf16> to vector<8x8xbf16>
    %cst_18 = arith.constant dense<0.000000e+00> : vector<8x8xf32>
    %34 = tpu.matmul %31, %32, %cst_18 {dimension_numbers = #tpu.dot_dimension_numbers<[1], [1], [0], [0], [0, 0, 1, 0], [], []>} : vector<8x8xbf16>, vector<8x8xbf16>, vector<8x8xf32> -> vector<8x8xf32>
    %35 = arith.addf %34, %26 : vector<8x8xf32>
    %cst_19 = arith.constant dense<0xFF800000> : vector<8xf32>
    %36 = vector.multi_reduction <maximumf>, %35, %cst_19 [1] : vector<8x8xf32> to vector<8xf32>
    %37 = vector.shape_cast %36 : vector<8xf32> to vector<8x1xf32>
    %38 = vector.broadcast %37 : vector<8x1xf32> to vector<8x8xf32>
    %39 = arith.subf %35, %38 : vector<8x8xf32>
    %40 = math.exp %39 : vector<8x8xf32>
    %cst_20 = arith.constant dense<0.000000e+00> : vector<8xf32>
    %41 = vector.multi_reduction <add>, %40, %cst_20 [1] : vector<8x8xf32> to vector<8xf32>
    %42 = vector.shape_cast %41 : vector<8xf32> to vector<8x1xf32>
    %43 = tpu.reciprocal %42 {approx = true} : vector<8x1xf32> -> vector<8x1xf32>
    %44 = arith.truncf %40 : vector<8x8xf32> to vector<8x8xbf16>
    %cst_21 = arith.constant dense<0.000000e+00> : vector<8x8xf32>
    %45 = tpu.matmul %44, %33, %cst_21 {dimension_numbers = #tpu.dot_dimension_numbers<[1], [0], [0], [1], [0, 0, 1, 1], [], []>} : vector<8x8xbf16>, vector<8x8xbf16>, vector<8x8xf32> -> vector<8x8xf32>
    %46 = vector.broadcast %43 : vector<8x1xf32> to vector<8x8xf32>
    %47 = arith.mulf %45, %46 : vector<8x8xf32>
    %48 = arith.truncf %47 : vector<8x8xf32> to vector<8x8xbf16>
    %49 = vector.extract_strided_slice %27 {offsets = [0, 0], sizes = [8, 32], strides = [1, 1]} : vector<32x32xbf16> to vector<8x32xbf16>
    %cst_22 = arith.constant dense<0.000000e+00> : vector<8x32xf32>
    %50 = tpu.matmul %48, %49, %cst_22 {dimension_numbers = #tpu.dot_dimension_numbers<[1], [0], [0], [1], [0, 0, 1, 1], [], []>} : vector<8x8xbf16>, vector<8x32xbf16>, vector<8x32xf32> -> vector<8x32xf32>
    %51 = arith.addf %30, %50 : vector<8x32xf32>
    %52 = vector.extract_strided_slice %23 {offsets = [0, 8], sizes = [8, 8], strides = [1, 1]} : vector<8x32xbf16> to vector<8x8xbf16>
    %53 = vector.extract_strided_slice %28 {offsets = [0, 8], sizes = [8, 8], strides = [1, 1]} : vector<8x32xbf16> to vector<8x8xbf16>
    %54 = vector.extract_strided_slice %29 {offsets = [0, 8], sizes = [8, 8], strides = [1, 1]} : vector<8x32xbf16> to vector<8x8xbf16>
    %cst_23 = arith.constant dense<0.000000e+00> : vector<8x8xf32>
    %55 = tpu.matmul %52, %53, %cst_23 {dimension_numbers = #tpu.dot_dimension_numbers<[1], [1], [0], [0], [0, 0, 1, 0], [], []>} : vector<8x8xbf16>, vector<8x8xbf16>, vector<8x8xf32> -> vector<8x8xf32>
    %56 = arith.addf %55, %26 : vector<8x8xf32>
    %cst_24 = arith.constant dense<0xFF800000> : vector<8xf32>
    %57 = vector.multi_reduction <maximumf>, %56, %cst_24 [1] : vector<8x8xf32> to vector<8xf32>
    %58 = vector.shape_cast %57 : vector<8xf32> to vector<8x1xf32>
    %59 = vector.broadcast %58 : vector<8x1xf32> to vector<8x8xf32>
    %60 = arith.subf %56, %59 : vector<8x8xf32>
    %61 = math.exp %60 : vector<8x8xf32>
    %cst_25 = arith.constant dense<0.000000e+00> : vector<8xf32>
    %62 = vector.multi_reduction <add>, %61, %cst_25 [1] : vector<8x8xf32> to vector<8xf32>
    %63 = vector.shape_cast %62 : vector<8xf32> to vector<8x1xf32>
    %64 = tpu.reciprocal %63 {approx = true} : vector<8x1xf32> -> vector<8x1xf32>
    %65 = arith.truncf %61 : vector<8x8xf32> to vector<8x8xbf16>
    %cst_26 = arith.constant dense<0.000000e+00> : vector<8x8xf32>
    %66 = tpu.matmul %65, %54, %cst_26 {dimension_numbers = #tpu.dot_dimension_numbers<[1], [0], [0], [1], [0, 0, 1, 1], [], []>} : vector<8x8xbf16>, vector<8x8xbf16>, vector<8x8xf32> -> vector<8x8xf32>
    %67 = vector.broadcast %64 : vector<8x1xf32> to vector<8x8xf32>
    %68 = arith.mulf %66, %67 : vector<8x8xf32>
    %69 = arith.truncf %68 : vector<8x8xf32> to vector<8x8xbf16>
    %70 = vector.extract_strided_slice %27 {offsets = [8, 0], sizes = [8, 32], strides = [1, 1]} : vector<32x32xbf16> to vector<8x32xbf16>
    %cst_27 = arith.constant dense<0.000000e+00> : vector<8x32xf32>
    %71 = tpu.matmul %69, %70, %cst_27 {dimension_numbers = #tpu.dot_dimension_numbers<[1], [0], [0], [1], [0, 0, 1, 1], [], []>} : vector<8x8xbf16>, vector<8x32xbf16>, vector<8x32xf32> -> vector<8x32xf32>
    %72 = arith.addf %51, %71 : vector<8x32xf32>
    %73 = vector.extract_strided_slice %23 {offsets = [0, 16], sizes = [8, 8], strides = [1, 1]} : vector<8x32xbf16> to vector<8x8xbf16>
    %74 = vector.extract_strided_slice %28 {offsets = [0, 16], sizes = [8, 8], strides = [1, 1]} : vector<8x32xbf16> to vector<8x8xbf16>
    %75 = vector.extract_strided_slice %29 {offsets = [0, 16], sizes = [8, 8], strides = [1, 1]} : vector<8x32xbf16> to vector<8x8xbf16>
    %cst_28 = arith.constant dense<0.000000e+00> : vector<8x8xf32>
    %76 = tpu.matmul %73, %74, %cst_28 {dimension_numbers = #tpu.dot_dimension_numbers<[1], [1], [0], [0], [0, 0, 1, 0], [], []>} : vector<8x8xbf16>, vector<8x8xbf16>, vector<8x8xf32> -> vector<8x8xf32>
    %77 = arith.addf %76, %26 : vector<8x8xf32>
    %cst_29 = arith.constant dense<0xFF800000> : vector<8xf32>
    %78 = vector.multi_reduction <maximumf>, %77, %cst_29 [1] : vector<8x8xf32> to vector<8xf32>
    %79 = vector.shape_cast %78 : vector<8xf32> to vector<8x1xf32>
    %80 = vector.broadcast %79 : vector<8x1xf32> to vector<8x8xf32>
    %81 = arith.subf %77, %80 : vector<8x8xf32>
    %82 = math.exp %81 : vector<8x8xf32>
    %cst_30 = arith.constant dense<0.000000e+00> : vector<8xf32>
    %83 = vector.multi_reduction <add>, %82, %cst_30 [1] : vector<8x8xf32> to vector<8xf32>
    %84 = vector.shape_cast %83 : vector<8xf32> to vector<8x1xf32>
    %85 = tpu.reciprocal %84 {approx = true} : vector<8x1xf32> -> vector<8x1xf32>
    %86 = arith.truncf %82 : vector<8x8xf32> to vector<8x8xbf16>
    %cst_31 = arith.constant dense<0.000000e+00> : vector<8x8xf32>
    %87 = tpu.matmul %86, %75, %cst_31 {dimension_numbers = #tpu.dot_dimension_numbers<[1], [0], [0], [1], [0, 0, 1, 1], [], []>} : vector<8x8xbf16>, vector<8x8xbf16>, vector<8x8xf32> -> vector<8x8xf32>
    %88 = vector.broadcast %85 : vector<8x1xf32> to vector<8x8xf32>
    %89 = arith.mulf %87, %88 : vector<8x8xf32>
    %90 = arith.truncf %89 : vector<8x8xf32> to vector<8x8xbf16>
    %91 = vector.extract_strided_slice %27 {offsets = [16, 0], sizes = [8, 32], strides = [1, 1]} : vector<32x32xbf16> to vector<8x32xbf16>
    %cst_32 = arith.constant dense<0.000000e+00> : vector<8x32xf32>
    %92 = tpu.matmul %90, %91, %cst_32 {dimension_numbers = #tpu.dot_dimension_numbers<[1], [0], [0], [1], [0, 0, 1, 1], [], []>} : vector<8x8xbf16>, vector<8x32xbf16>, vector<8x32xf32> -> vector<8x32xf32>
    %93 = arith.addf %72, %92 : vector<8x32xf32>
    %94 = vector.extract_strided_slice %23 {offsets = [0, 24], sizes = [8, 8], strides = [1, 1]} : vector<8x32xbf16> to vector<8x8xbf16>
    %95 = vector.extract_strided_slice %28 {offsets = [0, 24], sizes = [8, 8], strides = [1, 1]} : vector<8x32xbf16> to vector<8x8xbf16>
    %96 = vector.extract_strided_slice %29 {offsets = [0, 24], sizes = [8, 8], strides = [1, 1]} : vector<8x32xbf16> to vector<8x8xbf16>
    %cst_33 = arith.constant dense<0.000000e+00> : vector<8x8xf32>
    %97 = tpu.matmul %94, %95, %cst_33 {dimension_numbers = #tpu.dot_dimension_numbers<[1], [1], [0], [0], [0, 0, 1, 0], [], []>} : vector<8x8xbf16>, vector<8x8xbf16>, vector<8x8xf32> -> vector<8x8xf32>
    %98 = arith.addf %97, %26 : vector<8x8xf32>
    %cst_34 = arith.constant dense<0xFF800000> : vector<8xf32>
    %99 = vector.multi_reduction <maximumf>, %98, %cst_34 [1] : vector<8x8xf32> to vector<8xf32>
    %100 = vector.shape_cast %99 : vector<8xf32> to vector<8x1xf32>
    %101 = vector.broadcast %100 : vector<8x1xf32> to vector<8x8xf32>
    %102 = arith.subf %98, %101 : vector<8x8xf32>
    %103 = math.exp %102 : vector<8x8xf32>
    %cst_35 = arith.constant dense<0.000000e+00> : vector<8xf32>
    %104 = vector.multi_reduction <add>, %103, %cst_35 [1] : vector<8x8xf32> to vector<8xf32>
    %105 = vector.shape_cast %104 : vector<8xf32> to vector<8x1xf32>
    %106 = tpu.reciprocal %105 {approx = true} : vector<8x1xf32> -> vector<8x1xf32>
    %107 = arith.truncf %103 : vector<8x8xf32> to vector<8x8xbf16>
    %cst_36 = arith.constant dense<0.000000e+00> : vector<8x8xf32>
    %108 = tpu.matmul %107, %96, %cst_36 {dimension_numbers = #tpu.dot_dimension_numbers<[1], [0], [0], [1], [0, 0, 1, 1], [], []>} : vector<8x8xbf16>, vector<8x8xbf16>, vector<8x8xf32> -> vector<8x8xf32>
    %109 = vector.broadcast %106 : vector<8x1xf32> to vector<8x8xf32>
    %110 = arith.mulf %108, %109 : vector<8x8xf32>
    %111 = arith.truncf %110 : vector<8x8xf32> to vector<8x8xbf16>
    %112 = vector.extract_strided_slice %27 {offsets = [24, 0], sizes = [8, 32], strides = [1, 1]} : vector<32x32xbf16> to vector<8x32xbf16>
    %cst_37 = arith.constant dense<0.000000e+00> : vector<8x32xf32>
    %113 = tpu.matmul %111, %112, %cst_37 {dimension_numbers = #tpu.dot_dimension_numbers<[1], [0], [0], [1], [0, 0, 1, 1], [], []>} : vector<8x8xbf16>, vector<8x32xbf16>, vector<8x32xf32> -> vector<8x32xf32>
    %114 = arith.addf %93, %113 : vector<8x32xf32>
    %c0_38 = arith.constant 0 : index
    %c0_39 = arith.constant 0 : index
    %115 = vector.load %arg9[%c0_38, %c0_39] : memref<1x32xf32, #tpu.memory_space<vmem>>, vector<1x32xf32>
    %116 = vector.broadcast %115 : vector<1x32xf32> to vector<8x32xf32>
    %117 = arith.addf %114, %116 : vector<8x32xf32>
    %c0_40 = arith.constant 0 : index
    %c0_41 = arith.constant 0 : index
    %c0_42 = arith.constant 0 : index
    %118 = vector.load %arg10[%c0_40, %c0_41, %c0_42] : memref<1x8x32xf32, #tpu.memory_space<vmem>>, vector<1x8x32xf32>
    %119 = vector.shape_cast %118 : vector<1x8x32xf32> to vector<8x32xf32>
    %120 = vector.shape_cast %117 : vector<8x32xf32> to vector<1x8x32xf32>
    tpu.vector_store %arg10[%c0_40, %c0_41, %c0_42], %120 {strides = array<i32>} : memref<1x8x32xf32, #tpu.memory_space<vmem>>, vector<1x8x32xf32>,
    return
  }
  func.func @transform_0(%arg0: i32, %arg1: i32) -> (i32, i32, i32) {
    %c0_i32 = arith.constant 0 : i32
    %c0_i32_0 = arith.constant 0 : i32
    %c0_i32_1 = arith.constant 0 : i32
    return %arg0, %c0_i32, %c0_i32_0 : i32, i32, i32
  }
  func.func @transform_1(%arg0: i32, %arg1: i32) -> (i32, i32, i32) {
    %c0_i32 = arith.constant 0 : i32
    %c0_i32_0 = arith.constant 0 : i32
    %c0_i32_1 = arith.constant 0 : i32
    return %arg0, %c0_i32, %c0_i32_0 : i32, i32, i32
  }
  func.func @transform_2(%arg0: i32, %arg1: i32) -> (i32, i32, i32) {
    %c0_i32 = arith.constant 0 : i32
    %c0_i32_0 = arith.constant 0 : i32
    %c0_i32_1 = arith.constant 0 : i32
    return %arg0, %c0_i32, %c0_i32_0 : i32, i32, i32
  }
  func.func @transform_3(%arg0: i32, %arg1: i32) -> (i32, i32, i32) {
    %c0_i32 = arith.constant 0 : i32
    %c0_i32_0 = arith.constant 0 : i32
    return %arg0, %arg1, %c0_i32 : i32, i32, i32
  }
  func.func @transform_4(%arg0: i32, %arg1: i32) -> (i32, i32) {
    %c0_i32 = arith.constant 0 : i32
    %c0_i32_0 = arith.constant 0 : i32
    %c0_i32_1 = arith.constant 0 : i32
    return %c0_i32, %c0_i32_0 : i32, i32
  }
  func.func @transform_5(%arg0: i32, %arg1: i32) -> (i32, i32) {
    %c0_i32 = arith.constant 0 : i32
    %c0_i32_0 = arith.constant 0 : i32
    %c0_i32_1 = arith.constant 0 : i32
    return %c0_i32, %c0_i32_0 : i32, i32
  }
  func.func @transform_6(%arg0: i32, %arg1: i32) -> (i32, i32) {
    %c0_i32 = arith.constant 0 : i32
    %c0_i32_0 = arith.constant 0 : i32
    %c0_i32_1 = arith.constant 0 : i32
    return %c0_i32, %c0_i32_0 : i32, i32
  }
  func.func @transform_7(%arg0: i32, %arg1: i32) -> (i32, i32) {
    %c0_i32 = arith.constant 0 : i32
    %c0_i32_0 = arith.constant 0 : i32
    %c0_i32_1 = arith.constant 0 : i32
    return %c0_i32, %c0_i32_0 : i32, i32
  }
  func.func @transform_8(%arg0: i32, %arg1: i32) -> (i32, i32, i32) {
    %c0_i32 = arith.constant 0 : i32
    %c0_i32_0 = arith.constant 0 : i32
    return %arg0, %arg1, %c0_i32 : i32, i32, i32
  }
}

</mosaic_0001>

<llo_original>
// kernel: tpu_custom_call.1
$region0: #{tpu_custom_call.1}
  #allocation0 [shape = 'u32[]', space=smem, size = 0x4, offset = 0x4, fixed_abs, tag = 'smem constant byte address 0x4 - core index']
  #allocation1 [shape = 'u32[144,128]{1,0:T(1,128)}', space=vmem, size = 0x12000, scoped, tag = 'internal scratch']
  #allocation2 [shape = 'bf16[8,32]{1,0:T(8,128)(2,1)}', space=vmem, size = 0x800, scoped, tag = 'scratch operand']
  #allocation3 [shape = 'bf16[8,32]{1,0:T(8,128)(2,1)}', space=vmem, size = 0x800, scoped, tag = 'scratch operand']
  %s0 = inlined_call_operand.hbm [shape: bf16[2,8,32], index: 0, kind: input, shape index: {}]
  %s1 = inlined_call_operand.hbm [shape: f32[2,8,8], index: 1, kind: input, shape index: {}]
  %s2 = inlined_call_operand.hbm [shape: f32[2,8,8], index: 2, kind: input, shape index: {}]
  %s3 = inlined_call_operand.hbm [shape: bf16[2,8,8], index: 3, kind: input, shape index: {}]
  %s4 = inlined_call_operand.hbm [shape: bf16[32,64], index: 4, kind: input, shape index: {}]
  %s5 = inlined_call_operand.hbm [shape: bf16[32,96], index: 5, kind: input, shape index: {}]
  %s6 = inlined_call_operand.hbm [shape: bf16[32,32], index: 6, kind: input, shape index: {}]
  %s7 = inlined_call_operand.hbm [shape: f32[1,32], index: 7, kind: input, shape index: {}]
  %s8 = inlined_call_operand.hbm [shape: f32[2,8,32], index: 8, kind: output, shape index: {}]
  %s9 = sld [smem:[#allocation0]]
  $region101: #{tpu_custom_call.1} parent=0
    _
  %s11 = ssub.s32 1, %s9
  %s12 = scalar_select 0, %s11, %s9
  $region1: #{tpu_custom_call.1} parent=0
    #allocation4 [shape = 'u8[4096]{0}', space=vmem, size = 0x1000, scoped, tag = 'input window, operand 0']
    #allocation5 [shape = 's32[2]{0}', space=sflag, size = 0x8, scoped, tag = 'scoped memory for tpu_custom_call.1']
    #allocation6 [shape = 's32[2]{0}', space=sflag, size = 0x8, scoped, tag = 'scoped memory for tpu_custom_call.1']
    #allocation7 [shape = 'u8[8192]{0}', space=vmem, size = 0x2000, scoped, tag = 'input window, operand 1']
    #allocation8 [shape = 's32[2]{0}', space=sflag, size = 0x8, scoped, tag = 'scoped memory for tpu_custom_call.1']
    #allocation9 [shape = 'u8[8192]{0}', space=vmem, size = 0x2000, scoped, tag = 'input window, operand 2']
    #allocation10 [shape = 'u8[4096]{0}', space=vmem, size = 0x1000, scoped, tag = 'input window, operand 3']
    #allocation11 [shape = 's32[2]{0}', space=sflag, size = 0x8, scoped, tag = 'scoped memory for tpu_custom_call.1']
    #allocation12 [shape = 'u8[8192]{0}', space=vmem, size = 0x2000, scoped, tag = 'input window, operand 4, single buffered']
    #allocation13 [shape = 'u8[8192]{0}', space=vmem, size = 0x2000, scoped, tag = 'input window, operand 5, single buffered']
    #allocation14 [shape = 's32[1]{0}', space=sflag, size = 0x4, scoped, tag = 'scoped memory for tpu_custom_call.1']
    #allocation15 [shape = 'u8[8192]{0}', space=vmem, size = 0x2000, scoped, tag = 'input window, operand 6, single buffered']
    #allocation16 [shape = 'u8[512]{0}', space=vmem, size = 0x400, scoped, tag = 'input window, operand 7, single buffered']
    #allocation17 [shape = 's32[1]{0}', space=sflag, size = 0x4, scoped, tag = 'scoped memory for tpu_custom_call.1']
    #allocation18 [shape = 'u8[8192]{0}', space=vmem, size = 0x2000, scoped, tag = 'output window, operand 0']
    %13 = vsyncpa [#allocation5], 0
    %s14 = scalar_lea.sflag [#allocation5], 1
    %15 = vsyncpa %s14, 0
    %16 = vsyncpa [#allocation8], 0
    %s17 = scalar_lea.sflag [#allocation8], 1
    %18 = vsyncpa %s17, 0
    %19 = vsyncpa [#allocation11], 0
    %s20 = scalar_lea.sflag [#allocation11], 1
    %21 = vsyncpa %s20, 0
    %22 = vsyncpa [#allocation14], 0
    %23 = vsyncpa [#allocation17], 0
    %24 = vsyncpa [#allocation6], 0
    %s25 = scalar_lea.sflag [#allocation6], 1
    %26 = vsyncpa %s25, 0
    loop: start=0, step=1, limit=4
    $region2: #{tpu_custom_call.1} parent=1 // loop_pre_header
      _
    $region3: #{tpu_custom_call.1} parent=1 // loop_header
      %s28 = sphi 0, %s32
      %p29 = scmp.ge.s32.totalorder %s28, 4
      %s35 = sphi 0, %s47
      %s36 = sphi 0, %s43
      %s37 = sphi 0, %s35
      %s38 = sphi 0, %s36
      %s39 = sphi 0, %s37
      %s40 = sphi 0, %s38
      %s50 = sphi 0, %s52
      %s53 = sphi 0, %s50
      %s54 = sphi 0, %s53
      %s70 = sphi 0, %s54
      %s76 = sphi 0, %s78
      %s79 = sphi 0, %s76
      %s80 = sphi 0, %s79
      %s96 = sphi 0, %s80
      %s102 = sphi 0, %s104
      %s105 = sphi 0, %s102
      %s106 = sphi 0, %s105
      %s122 = sphi 0, %s106
      %s130 = sphi 0, %s132
      %s133 = sphi 0, %s130
      %s134 = sphi 0, %s133
      %s150 = sphi 0, %s134
      %s154 = sphi 0, %s154
      %s156 = sphi 0, %s154
      %s157 = sphi 0, %s156
      %s171 = sphi 0, %s157
      %s175 = sphi 0, %s175
      %s177 = sphi 0, %s175
      %s178 = sphi 0, %s177
      %s192 = sphi 0, %s178
      %s196 = sphi 0, %s196
      %s198 = sphi 0, %s196
      %s199 = sphi 0, %s198
      %s213 = sphi 0, %s199
      %s217 = sphi 0, %s217
      %s219 = sphi 0, %s217
      %s220 = sphi 0, %s219
      %s234 = sphi 0, %s220
      %s242 = sphi 0, %s244
      %s245 = sphi 0, %s242
      %s246 = sphi 0, %s245
      %s262 = sphi 0, %s246
    $region4: #{tpu_custom_call.1} parent=1 // loop_header_branch
      %31 = sbr.rel (%p29) target = $region8
    $region5: #{tpu_custom_call.1} parent=1 // loop_body
      %s33 = ssub.s32 %s28, 1
      %s34 = ssub.s32 %s28, 2
      %s41 = sadd.s32 1, %s36
      %p42 = scmp.ge.s32.totalorder %s41, 1
      %s43 = scalar_select %p42, 0, %s41
      %s44 = sadd.s32 1, %s35
      %s45 = scalar_select %p42, %s44, %s35
      %p46 = scmp.ge.s32.totalorder %s45, 2
      %s47 = scalar_select %p46, 0, %s45
      %s48 = ssub.s32 %s35, %s47
      %p49 = scmp.eq.s32.totalorder %s48, 0
      %s51 = sadd.s32 %s50, 1
      %s52 = scalar_select %p49, %s50, %s51
      %p55 = pneg %p49
      %p56 = scmp.eq.s32.totalorder %s28, 1
      %p57 = por %p55, %p56
      %p58 = scmp.ne.s32.totalorder %s50, %s53
      %p59 = scmp.eq.s32.totalorder %s28, 0
      %p60 = por %p58, %p59
      %p61 = scmp.ne.s32.totalorder %s50, %s53
      %p62 = scmp.eq.s32.totalorder %s33, 1
      %p63 = por %p61, %p62
      %p64 = scmp.ne.s32.totalorder %s53, %s54
      %p65 = scmp.eq.s32.totalorder %s33, 0
      %p66 = por %p64, %p65
      %p67 = scmp.ne.s32.totalorder %s53, %s54
      %p68 = scmp.eq.s32.totalorder %s34, 1
      %p69 = por %p67, %p68
      %p71 = scmp.ne.s32.totalorder %s54, %s70
      %p72 = scmp.eq.s32.totalorder %s34, 0
      %p73 = por %p71, %p72
      %s74 = ssub.s32 %s35, %s47
      %p75 = scmp.eq.s32.totalorder %s74, 0
      %s77 = sadd.s32 %s76, 1
      %s78 = scalar_select %p75, %s76, %s77
      %p81 = pneg %p75
      %p82 = scmp.eq.s32.totalorder %s28, 1
      %p83 = por %p81, %p82
      %p84 = scmp.ne.s32.totalorder %s76, %s79
      %p85 = scmp.eq.s32.totalorder %s28, 0
      %p86 = por %p84, %p85
      %p87 = scmp.ne.s32.totalorder %s76, %s79
      %p88 = scmp.eq.s32.totalorder %s33, 1
      %p89 = por %p87, %p88
      %p90 = scmp.ne.s32.totalorder %s79, %s80
      %p91 = scmp.eq.s32.totalorder %s33, 0
      %p92 = por %p90, %p91
      %p93 = scmp.ne.s32.totalorder %s79, %s80
      %p94 = scmp.eq.s32.totalorder %s34, 1
      %p95 = por %p93, %p94
      %p97 = scmp.ne.s32.totalorder %s80, %s96
      %p98 = scmp.eq.s32.totalorder %s34, 0
      %p99 = por %p97, %p98
      %s100 = ssub.s32 %s35, %s47
      %p101 = scmp.eq.s32.totalorder %s100, 0
      %s103 = sadd.s32 %s102, 1
      %s104 = scalar_select %p101, %s102, %s103
      %p107 = pneg %p101
      %p108 = scmp.eq.s32.totalorder %s28, 1
      %p109 = por %p107, %p108
      %p110 = scmp.ne.s32.totalorder %s102, %s105
      %p111 = scmp.eq.s32.totalorder %s28, 0
      %p112 = por %p110, %p111
      %p113 = scmp.ne.s32.totalorder %s102, %s105
      %p114 = scmp.eq.s32.totalorder %s33, 1
      %p115 = por %p113, %p114
      %p116 = scmp.ne.s32.totalorder %s105, %s106
      %p117 = scmp.eq.s32.totalorder %s33, 0
      %p118 = por %p116, %p117
      %p119 = scmp.ne.s32.totalorder %s105, %s106
      %p120 = scmp.eq.s32.totalorder %s34, 1
      %p121 = por %p119, %p120
      %p123 = scmp.ne.s32.totalorder %s106, %s122
      %p124 = scmp.eq.s32.totalorder %s34, 0
      %p125 = por %p123, %p124
      %s126 = ssub.s32 %s35, %s47
      %s127 = ssub.s32 %s36, %s43
      %s128 = sor.u32 %s126, %s127
      %p129 = scmp.eq.s32.totalorder %s128, 0
      %s131 = sadd.s32 %s130, 1
      %s132 = scalar_select %p129, %s130, %s131
      %p135 = pneg %p129
      %p136 = scmp.eq.s32.totalorder %s28, 1
      %p137 = por %p135, %p136
      %p138 = scmp.ne.s32.totalorder %s130, %s133
      %p139 = scmp.eq.s32.totalorder %s28, 0
      %p140 = por %p138, %p139
      %p141 = scmp.ne.s32.totalorder %s130, %s133
      %p142 = scmp.eq.s32.totalorder %s33, 1
      %p143 = por %p141, %p142
      %p144 = scmp.ne.s32.totalorder %s133, %s134
      %p145 = scmp.eq.s32.totalorder %s33, 0
      %p146 = por %p144, %p145
      %p147 = scmp.ne.s32.totalorder %s133, %s134
      %p148 = scmp.eq.s32.totalorder %s34, 1
      %p149 = por %p147, %p148
      %p151 = scmp.ne.s32.totalorder %s134, %s150
      %p152 = scmp.eq.s32.totalorder %s34, 0
      %p153 = por %p151, %p152
      %s155 = sadd.s32 %s154, 1
      %p158 = scmp.eq.s32.totalorder %s28, 1
      %p159 = scmp.ne.s32.totalorder %s154, %s156
      %p160 = scmp.eq.s32.totalorder %s28, 0
      %p161 = por %p159, %p160
      %p162 = scmp.ne.s32.totalorder %s154, %s156
      %p163 = scmp.eq.s32.totalorder %s33, 1
      %p164 = por %p162, %p163
      %p165 = scmp.ne.s32.totalorder %s156, %s157
      %p166 = scmp.eq.s32.totalorder %s33, 0
      %p167 = por %p165, %p166
      %p168 = scmp.ne.s32.totalorder %s156, %s157
      %p169 = scmp.eq.s32.totalorder %s34, 1
      %p170 = por %p168, %p169
      %p172 = scmp.ne.s32.totalorder %s157, %s171
      %p173 = scmp.eq.s32.totalorder %s34, 0
      %p174 = por %p172, %p173
      %s176 = sadd.s32 %s175, 1
      %p179 = scmp.eq.s32.totalorder %s28, 1
      %p180 = scmp.ne.s32.totalorder %s175, %s177
      %p181 = scmp.eq.s32.totalorder %s28, 0
      %p182 = por %p180, %p181
      %p183 = scmp.ne.s32.totalorder %s175, %s177
      %p184 = scmp.eq.s32.totalorder %s33, 1
      %p185 = por %p183, %p184
      %p186 = scmp.ne.s32.totalorder %s177, %s178
      %p187 = scmp.eq.s32.totalorder %s33, 0
      %p188 = por %p186, %p187
      %p189 = scmp.ne.s32.totalorder %s177, %s178
      %p190 = scmp.eq.s32.totalorder %s34, 1
      %p191 = por %p189, %p190
      %p193 = scmp.ne.s32.totalorder %s178, %s192
      %p194 = scmp.eq.s32.totalorder %s34, 0
      %p195 = por %p193, %p194
      %s197 = sadd.s32 %s196, 1
      %p200 = scmp.eq.s32.totalorder %s28, 1
      %p201 = scmp.ne.s32.totalorder %s196, %s198
      %p202 = scmp.eq.s32.totalorder %s28, 0
      %p203 = por %p201, %p202
      %p204 = scmp.ne.s32.totalorder %s196, %s198
      %p205 = scmp.eq.s32.totalorder %s33, 1
      %p206 = por %p204, %p205
      %p207 = scmp.ne.s32.totalorder %s198, %s199
      %p208 = scmp.eq.s32.totalorder %s33, 0
      %p209 = por %p207, %p208
      %p210 = scmp.ne.s32.totalorder %s198, %s199
      %p211 = scmp.eq.s32.totalorder %s34, 1
      %p212 = por %p210, %p211
      %p214 = scmp.ne.s32.totalorder %s199, %s213
      %p215 = scmp.eq.s32.totalorder %s34, 0
      %p216 = por %p214, %p215
      %s218 = sadd.s32 %s217, 1
      %p221 = scmp.eq.s32.totalorder %s28, 1
      %p222 = scmp.ne.s32.totalorder %s217, %s219
      %p223 = scmp.eq.s32.totalorder %s28, 0
      %p224 = por %p222, %p223
      %p225 = scmp.ne.s32.totalorder %s217, %s219
      %p226 = scmp.eq.s32.totalorder %s33, 1
      %p227 = por %p225, %p226
      %p228 = scmp.ne.s32.totalorder %s219, %s220
      %p229 = scmp.eq.s32.totalorder %s33, 0
      %p230 = por %p228, %p229
      %p231 = scmp.ne.s32.totalorder %s219, %s220
      %p232 = scmp.eq.s32.totalorder %s34, 1
      %p233 = por %p231, %p232
      %p235 = scmp.ne.s32.totalorder %s220, %s234
      %p236 = scmp.eq.s32.totalorder %s34, 0
      %p237 = por %p235, %p236
      %s238 = ssub.s32 %s35, %s47
      %s239 = ssub.s32 %s36, %s43
      %s240 = sor.u32 %s238, %s239
      %p241 = scmp.eq.s32.totalorder %s240, 0
      %s243 = sadd.s32 %s242, 1
      %s244 = scalar_select %p241, %s242, %s243
      %p247 = pneg %p241
      %p248 = scmp.eq.s32.totalorder %s28, 1
      %p249 = por %p247, %p248
      %p250 = scmp.ne.s32.totalorder %s242, %s245
      %p251 = scmp.eq.s32.totalorder %s28, 0
      %p252 = por %p250, %p251
      %p253 = scmp.ne.s32.totalorder %s242, %s245
      %p254 = scmp.eq.s32.totalorder %s33, 1
      %p255 = por %p253, %p254
      %p256 = scmp.ne.s32.totalorder %s245, %s246
      %p257 = scmp.eq.s32.totalorder %s33, 0
      %p258 = por %p256, %p257
      %p259 = scmp.ne.s32.totalorder %s245, %s246
      %p260 = scmp.eq.s32.totalorder %s34, 1
      %p261 = por %p259, %p260
      %p263 = scmp.ne.s32.totalorder %s246, %s262
      %p264 = scmp.eq.s32.totalorder %s34, 0
      %p265 = por %p263, %p264
      %p266 = scmp.le.s32.totalorder 1, %s28
      %p267 = scmp.lt.s32.totalorder %s28, 3
      %p268 = pnand %p266, %p267
      %p269 = pneg %p268
      // Predicated region
      $region9: #{tpu_custom_call.1} parent=5 // pred_check
        _
      $region10: #{tpu_custom_call.1} parent=5 // pred_check_branch
        %271 = sbr.rel (%p268) target = $region12
      $region11: #{tpu_custom_call.1} parent=5 // pred_region
        %s272 = ssub.s32 %s28, 1
        // Predicated region
        $region13: #{tpu_custom_call.1} parent=11 // pred_check
          %p273 = pneg %p167
        $region14: #{tpu_custom_call.1} parent=11 // pred_check_branch
          %275 = sbr.rel (%p273) target = $region16
        $region15: #{tpu_custom_call.1} parent=11 // pred_region
          %s277 = ssub.s32 256, 256
          %278 = vsyncadd [#allocation11], %s277
          %s279 = sshll.u32 [#allocation12], 4
          %s280 = int_to_ptr.vmem [resolvable:$true] %s279
          %285 = dma.hbm_to_vmem [thread:$0]  %s4, 256, %s280, [#allocation11], 64, 64, 4
        $region16: #{tpu_custom_call.1} parent=11 // pred_fallthru
          _
        // Predicated region
        $region17: #{tpu_custom_call.1} parent=11 // pred_check
          %p286 = pneg %p188
        $region18: #{tpu_custom_call.1} parent=11 // pred_check_branch
          %288 = sbr.rel (%p286) target = $region20
        $region19: #{tpu_custom_call.1} parent=11 // pred_region
          %s290 = ssub.s32 256, 256
          %291 = vsyncadd [#allocation14], %s290
          %s292 = sshll.u32 [#allocation13], 4
          %s293 = int_to_ptr.vmem [resolvable:$true] %s292
          %298 = dma.hbm_to_vmem [thread:$0]  %s5, 256, %s293, [#allocation14], 64, 64, 4
        $region20: #{tpu_custom_call.1} parent=11 // pred_fallthru
          _
        // Predicated region
        $region21: #{tpu_custom_call.1} parent=11 // pred_check
          %p299 = pneg %p209
        $region22: #{tpu_custom_call.1} parent=11 // pred_check_branch
          %301 = sbr.rel (%p299) target = $region24
        $region23: #{tpu_custom_call.1} parent=11 // pred_region
          %s303 = ssub.s32 256, 256
          %304 = vsyncadd [#allocation14], %s303
          %s305 = sshll.u32 [#allocation15], 4
          %s306 = int_to_ptr.vmem [resolvable:$true] %s305
          %311 = dma.hbm_to_vmem [thread:$0]  %s6, 256, %s306, [#allocation14], 64, 64, 4
        $region24: #{tpu_custom_call.1} parent=11 // pred_fallthru
          _
        // Predicated region
        $region25: #{tpu_custom_call.1} parent=11 // pred_check
          %p312 = pneg %p230
        $region26: #{tpu_custom_call.1} parent=11 // pred_check_branch
          %314 = sbr.rel (%p312) target = $region28
        $region27: #{tpu_custom_call.1} parent=11 // pred_region
          %s316 = ssub.s32 16, 16
          %317 = vsyncadd [#allocation17], %s316
          %s319 = sshll.u32 [#allocation16], 4
          %s320 = int_to_ptr.vmem [resolvable:$true] %s319
          %322 = dma.hbm_to_vmem [thread:$0]  %s7, 16, %s320, [#allocation17]
        $region28: #{tpu_custom_call.1} parent=11 // pred_fallthru
          _
      $region12: #{tpu_custom_call.1} parent=5 // pred_fallthru
        _
      %p323 = scmp.lt.s32.totalorder %s28, 2
      // Predicated region
      $region29: #{tpu_custom_call.1} parent=5 // pred_check
        %p324 = pneg %p323
      $region30: #{tpu_custom_call.1} parent=5 // pred_check_branch
        %326 = sbr.rel (%p324) target = $region32
      $region31: #{tpu_custom_call.1} parent=5 // pred_region
        // Predicated region
        $region33: #{tpu_custom_call.1} parent=31 // pred_check
          %p327 = pneg %p60
        $region34: #{tpu_custom_call.1} parent=31 // pred_check_branch
          %329 = sbr.rel (%p327) target = $region36
        $region35: #{tpu_custom_call.1} parent=31 // pred_region
          %s330 = sand.u32 %s50, 1
          %s331 = scalar_lea.sflag [#allocation5], %s330
          %s332 = sand.u32 %s50, 1
          %s333 = smul.addr %s332, 4
          %s334 = scalar_lea.vmem [#allocation4], %s333
          %s336 = ssub.s32 64, 64
          %337 = vsyncadd %s331, %s336
          %s338 = smul.addr %s35, 64
          %s339 = scalar_lea.hbm %s0, %s338
          %s341 = sshll.u32 %s334, 4
          %s342 = int_to_ptr.vmem [resolvable:$true] %s341
          %344 = dma.hbm_to_vmem [thread:$0]  %s339, 64, %s342, %s331
        $region36: #{tpu_custom_call.1} parent=31 // pred_fallthru
          _
        // Predicated region
        $region37: #{tpu_custom_call.1} parent=31 // pred_check
          %p345 = pneg %p86
        $region38: #{tpu_custom_call.1} parent=31 // pred_check_branch
          %347 = sbr.rel (%p345) target = $region40
        $region39: #{tpu_custom_call.1} parent=31 // pred_region
          %s348 = sand.u32 %s28, 1
          %s349 = scalar_lea.sflag [#allocation8], %s348
          %s350 = sand.u32 %s76, 1
          %s351 = smul.addr %s350, 8
          %s352 = scalar_lea.vmem [#allocation7], %s351
          %s354 = ssub.s32 128, 128
          %355 = vsyncadd %s349, %s354
          %s356 = smul.addr %s35, 128
          %s357 = scalar_lea.hbm %s1, %s356
          %s359 = sshll.u32 %s352, 4
          %s360 = int_to_ptr.vmem [resolvable:$true] %s359
          %362 = dma.hbm_to_vmem [thread:$0]  %s357, 128, %s360, %s349
        $region40: #{tpu_custom_call.1} parent=31 // pred_fallthru
          _
        // Predicated region
        $region41: #{tpu_custom_call.1} parent=31 // pred_check
          %p363 = pneg %p112
        $region42: #{tpu_custom_call.1} parent=31 // pred_check_branch
          %365 = sbr.rel (%p363) target = $region44
        $region43: #{tpu_custom_call.1} parent=31 // pred_region
          %s366 = sand.u32 %s28, 1
          %s367 = scalar_lea.sflag [#allocation8], %s366
          %s368 = sand.u32 %s102, 1
          %s369 = smul.addr %s368, 8
          %s370 = scalar_lea.vmem [#allocation9], %s369
          %s372 = ssub.s32 128, 128
          %373 = vsyncadd %s367, %s372
          %s374 = smul.addr %s35, 128
          %s375 = scalar_lea.hbm %s2, %s374
          %s377 = sshll.u32 %s370, 4
          %s378 = int_to_ptr.vmem [resolvable:$true] %s377
          %380 = dma.hbm_to_vmem [thread:$0]  %s375, 128, %s378, %s367
        $region44: #{tpu_custom_call.1} parent=31 // pred_fallthru
          _
        // Predicated region
        $region45: #{tpu_custom_call.1} parent=31 // pred_check
          %p381 = pneg %p140
        $region46: #{tpu_custom_call.1} parent=31 // pred_check_branch
          %383 = sbr.rel (%p381) target = $region48
        $region47: #{tpu_custom_call.1} parent=31 // pred_region
          %s384 = sand.u32 %s28, 1
          %s385 = scalar_lea.sflag [#allocation11], %s384
          %s386 = sand.u32 %s130, 1
          %s387 = smul.addr %s386, 4
          %s388 = scalar_lea.vmem [#allocation10], %s387
          %s390 = ssub.s32 64, 64
          %391 = vsyncadd %s385, %s390
          %s392 = sadd.s32 %s36, %s35
          %s393 = smul.addr %s392, 64
          %s394 = scalar_lea.hbm %s3, %s393
          %s396 = sshll.u32 %s388, 4
          %s397 = int_to_ptr.vmem [resolvable:$true] %s396
          %399 = dma.hbm_to_vmem [thread:$0]  %s394, 64, %s397, %s385
        $region48: #{tpu_custom_call.1} parent=31 // pred_fallthru
          _
      $region32: #{tpu_custom_call.1} parent=5 // pred_fallthru
        _
      %p400 = scmp.le.s32.totalorder 1, %s28
      %p401 = scmp.lt.s32.totalorder %s28, 3
      %p402 = pnand %p400, %p401
      %p403 = pneg %p402
      // Predicated region
      $region49: #{tpu_custom_call.1} parent=5 // pred_check
        _
      $region50: #{tpu_custom_call.1} parent=5 // pred_check_branch
        %405 = sbr.rel (%p402) target = $region52
      $region51: #{tpu_custom_call.1} parent=5 // pred_region
        %s406 = ssub.s32 %s28, 1
        %s407 = sand.u32 %s53, 1
        %s408 = scalar_lea.sflag [#allocation5], %s407
        %s409 = sand.u32 %s53, 1
        %s410 = smul.addr %s409, 4
        %s411 = scalar_lea.vmem [#allocation4], %s410
        // Predicated region
        $region53: #{tpu_custom_call.1} parent=51 // pred_check
          %p412 = pneg %p66
        $region54: #{tpu_custom_call.1} parent=51 // pred_check_branch
          %414 = sbr.rel (%p412) target = $region56
        $region55: #{tpu_custom_call.1} parent=51 // pred_region
          %415 = dma.done %s408, 64
        $region56: #{tpu_custom_call.1} parent=51 // pred_fallthru
          _
        %s416 = sand.u32 %s33, 1
        %s417 = scalar_lea.sflag [#allocation8], %s416
        %s418 = sand.u32 %s79, 1
        %s419 = smul.addr %s418, 8
        %s420 = scalar_lea.vmem [#allocation7], %s419
        // Predicated region
        $region57: #{tpu_custom_call.1} parent=51 // pred_check
          %p421 = pneg %p92
        $region58: #{tpu_custom_call.1} parent=51 // pred_check_branch
          %423 = sbr.rel (%p421) target = $region60
        $region59: #{tpu_custom_call.1} parent=51 // pred_region
          %424 = dma.done %s417, 128
        $region60: #{tpu_custom_call.1} parent=51 // pred_fallthru
          _
        %s425 = sand.u32 %s33, 1
        %s426 = scalar_lea.sflag [#allocation8], %s425
        %s427 = sand.u32 %s105, 1
        %s428 = smul.addr %s427, 8
        %s429 = scalar_lea.vmem [#allocation9], %s428
        // Predicated region
        $region61: #{tpu_custom_call.1} parent=51 // pred_check
          %p430 = pneg %p118
        $region62: #{tpu_custom_call.1} parent=51 // pred_check_branch
          %432 = sbr.rel (%p430) target = $region64
        $region63: #{tpu_custom_call.1} parent=51 // pred_region
          %433 = dma.done %s426, 128
        $region64: #{tpu_custom_call.1} parent=51 // pred_fallthru
          _
        %s434 = sand.u32 %s33, 1
        %s435 = scalar_lea.sflag [#allocation11], %s434
        %s436 = sand.u32 %s133, 1
        %s437 = smul.addr %s436, 4
        %s438 = scalar_lea.vmem [#allocation10], %s437
        // Predicated region
        $region65: #{tpu_custom_call.1} parent=51 // pred_check
          %p439 = pneg %p146
        $region66: #{tpu_custom_call.1} parent=51 // pred_check_branch
          %441 = sbr.rel (%p439) target = $region68
        $region67: #{tpu_custom_call.1} parent=51 // pred_region
          %442 = dma.done %s435, 64
        $region68: #{tpu_custom_call.1} parent=51 // pred_fallthru
          _
        // Predicated region
        $region69: #{tpu_custom_call.1} parent=51 // pred_check
          %p443 = pneg %p167
        $region70: #{tpu_custom_call.1} parent=51 // pred_check_branch
          %445 = sbr.rel (%p443) target = $region72
        $region71: #{tpu_custom_call.1} parent=51 // pred_region
          %446 = dma.done [#allocation11], 256
        $region72: #{tpu_custom_call.1} parent=51 // pred_fallthru
          _
        // Predicated region
        $region73: #{tpu_custom_call.1} parent=51 // pred_check
          %p447 = pneg %p188
        $region74: #{tpu_custom_call.1} parent=51 // pred_check_branch
          %449 = sbr.rel (%p447) target = $region76
        $region75: #{tpu_custom_call.1} parent=51 // pred_region
          %450 = dma.done [#allocation14], 256
        $region76: #{tpu_custom_call.1} parent=51 // pred_fallthru
          _
        // Predicated region
        $region77: #{tpu_custom_call.1} parent=51 // pred_check
          %p451 = pneg %p209
        $region78: #{tpu_custom_call.1} parent=51 // pred_check_branch
          %453 = sbr.rel (%p451) target = $region80
        $region79: #{tpu_custom_call.1} parent=51 // pred_region
          %454 = dma.done [#allocation14], 256
        $region80: #{tpu_custom_call.1} parent=51 // pred_fallthru
          _
        // Predicated region
        $region81: #{tpu_custom_call.1} parent=51 // pred_check
          %p455 = pneg %p230
        $region82: #{tpu_custom_call.1} parent=51 // pred_check_branch
          %457 = sbr.rel (%p455) target = $region84
        $region83: #{tpu_custom_call.1} parent=51 // pred_region
          %458 = dma.done [#allocation17], 16
        $region84: #{tpu_custom_call.1} parent=51 // pred_fallthru
          _
        %s459 = sand.u32 %s53, 1
        %s460 = scalar_lea.sflag [#allocation5], %s459
        %s461 = sand.u32 %s53, 1
        %s462 = smul.addr %s461, 4
        %s463 = scalar_lea.vmem [#allocation4], %s462
        %p464 = pneg %p66
        %p465 = pneg %p63
        %s466 = sand.u32 %s33, 1
        %s467 = scalar_lea.sflag [#allocation8], %s466
        %s468 = sand.u32 %s79, 1
        %s469 = smul.addr %s468, 8
        %s470 = scalar_lea.vmem [#allocation7], %s469
        %p471 = pneg %p92
        %p472 = pneg %p89
        %s473 = sand.u32 %s33, 1
        %s474 = scalar_lea.sflag [#allocation8], %s473
        %s475 = sand.u32 %s105, 1
        %s476 = smul.addr %s475, 8
        %s477 = scalar_lea.vmem [#allocation9], %s476
        %p478 = pneg %p118
        %p479 = pneg %p115
        %s480 = sand.u32 %s33, 1
        %s481 = scalar_lea.sflag [#allocation11], %s480
        %s482 = sand.u32 %s133, 1
        %s483 = smul.addr %s482, 4
        %s484 = scalar_lea.vmem [#allocation10], %s483
        %p485 = pneg %p146
        %p486 = pneg %p143
        %p487 = pneg %p167
        %p488 = pneg %p164
        %p489 = pneg %p188
        %p490 = pneg %p185
        %p491 = pneg %p209
        %p492 = pneg %p206
        %p493 = pneg %p230
        %p494 = pneg %p227
        %p495 = pneg %p258
        %p496 = pneg %p255
        %s497 = sand.u32 %s245, 1
        %s498 = scalar_lea.sflag [#allocation6], %s497
        %s499 = sand.u32 %s245, 1
        %s500 = smul.addr %s499, 8
        %s501 = scalar_lea.vmem [#allocation18], %s500
        %p503 = scmp.eq.s32.totalorder %s38, 0
        // Predicated region
        $region85: #{tpu_custom_call.1} parent=51 // pred_check
          %p504 = pneg %p503
        $region86: #{tpu_custom_call.1} parent=51 // pred_check_branch
          %506 = sbr.rel (%p504) target = $region88
        $region87: #{tpu_custom_call.1} parent=51 // pred_region
          %v507 = vld [vmem:[%s420] sm:$0xff]
          %v508 = vld [vmem:[%s429] sm:$0xff]
          %510 = vrot.lane.b32.xlu0 %v507, 8
          %v511 = vpop.permute.xlu0 %510
          %513 = vrot.lane.b32.xlu0 %v507, 16
          %v514 = vpop.permute.xlu0 %513
          %516 = vrot.lane.b32.xlu0 %v507, 24
          %v517 = vpop.permute.xlu0 %516
          %vm519 = vcmask 64512
          %v520 = vsel %vm519, %v507, %v511
          %vm521 = vcmask 130048
          %v522 = vsel %vm521, %v520, %v514
          %vm523 = vcmask 195584
          %v524 = vsel %vm523, %v522, %v517
          %526 = vrot.lane.b32.xlu0 %v508, 8
          %v527 = vpop.permute.xlu0 %526
          %529 = vrot.lane.b32.xlu0 %v508, 16
          %v530 = vpop.permute.xlu0 %529
          %532 = vrot.lane.b32.xlu0 %v508, 24
          %v533 = vpop.permute.xlu0 %532
          %v535 = vsel %vm519, %v508, %v527
          %v536 = vsel %vm521, %v535, %v530
          %v537 = vsel %vm523, %v536, %v533
          %v538 = vld [vmem:[%s411] sm:$0xf]
          %v539 = vld [vmem:[#allocation13] sm:$0xf]
          %v540 = vld [vmem:[#allocation13 + $0x4] sm:$0xf]
          %v541 = vld [vmem:[#allocation13 + $0x8] sm:$0xf]
          %v542 = vld [vmem:[#allocation13 + $0xc] sm:$0xf]
          %v547 = vunpack.c.l.b16 %v539
          %v548 = vunpack.c.l.b16 %v540
          %v549 = vunpack.c.l.b16 %v541
          %v550 = vunpack.c.l.b16 %v542
          %v551 = vpack.c.b16 %v548, %v547
          %v552 = vpack.c.b16 %v550, %v549
          %vm555 = vcmask 261120
          %v557 = vsel %vm555, %v538, 0
          %559 = vmatprep.subr.bf16.mxu0 0
          %560 = vmatpush1.bf16.msra.mxu0 %v551
          %561 = vmatprep.subr.bf16.mxu0 0
          %562 = vmatpush1.bf16.msra.mxu0 %v552
          %563 = vmatprep.subr.bf16.mxu0 0
          %564 = vmatpush1.bf16.msra.mxu0 0
          %565 = vmatprep.subr.bf16.mxu0 0
          %566 = vmatpush1.bf16.msra.mxu0 0
          %567 = vmatprep.subr.bf16.mxu0 0
          %568 = vmatpush1.bf16.msra.mxu0 0
          %569 = vmatprep.subr.bf16.mxu0 0
          %570 = vmatpush1.bf16.msra.mxu0 0
          %571 = vmatprep.subr.bf16.mxu0 0
          %572 = vmatpush1.bf16.msra.mxu0 0
          %573 = vmatprep.subr.bf16.mxu0 0
          %574 = vmatpush1.bf16.msra.mxu0 0
          %575 = vmatprep.subr.bf16.mxu0 0
          %576 = vmatpush1.bf16.msra.mxu0 0
          %577 = vmatprep.subr.bf16.mxu0 0
          %578 = vmatpush1.bf16.msra.mxu0 0
          %579 = vmatprep.subr.bf16.mxu0 0
          %580 = vmatpush1.bf16.msra.mxu0 0
          %581 = vmatprep.subr.bf16.mxu0 0
          %582 = vmatpush1.bf16.msra.mxu0 0
          %583 = vmatprep.subr.bf16.mxu0 0
          %584 = vmatpush1.bf16.msra.mxu0 0
          %585 = vmatprep.subr.bf16.mxu0 0
          %586 = vmatpush1.bf16.msra.mxu0 0
          %587 = vmatprep.subr.bf16.mxu0 0
          %588 = vmatpush1.bf16.msra.mxu0 0
          %589 = vmatprep.subr.bf16.mxu0 0
          %590 = vmatpush1.bf16.msra.mxu0 0
          %591 = vmatprep.mubr.bf16.mxu0 0
          %592 = vmatmul.mubr.bf16.gmra.mrb[0].mxu0 %v557
          %v593 = vpop.f32.mrb[0].mxu0
          %v594 = vadd.f32 0.0, %v593
          %v595 = vpop.f32.mrb[0].mxu0
          %v596 = vpop.f32.mrb[0].mxu0
          %v597 = vpop.f32.mrb[0].mxu0
          %598 = vdwg.mxu0
          %v599 = vmul.f32 %v594, %v524
          %601 = vrot.lane.b32.xlu0 %v537, 32
          %v602 = vpop.permute.xlu0 %601
          %v604 = vmul.f32 %v594, %v602
          %606 = vrot.lane.b32.xlu0 %v604, 96
          %v607 = vpop.permute.xlu0 %606
          %v609 = vadd.f32 %v599, %v607
          %v610 = vpack.c.bf16 %v609, %v609
          %vm611 = vcmask 257024
          %612 = vst.msk [vmem:[#allocation2] sm:$0xf] %vm611, %v610
          %v613 = vpack.c.bf16 %v594, %v594
          %v615 = vunpack.c.l.b16 %v613
          %v616 = vpack.c.b16 %v615, %v615
          %617 = vrot.lane.b32.xlu0 %v616, 64
          %v618 = vpop.permute.xlu0 %617
          %620 = vst.msk [vmem:[#allocation3] sm:$0xf] %vm611, %v618
        $region88: #{tpu_custom_call.1} parent=51 // pred_fallthru
          _
        %s621 = smul.u32 %s38, 8
        %s622 = sshra.s32 %s621, 3
        %s623 = sand.u32 %s621, 7
        %s624 = smul.addr %s622, 4
        %s625 = scalar_lea.vmem %s411, %s624 [#allocation4]
        %v626 = vld [vmem:[%s625] sm:$0xf]
        %v627 = vld [vmem:[#allocation12] sm:$0xf]
        %v628 = vld [vmem:[#allocation12 + $0x4] sm:$0xf]
        %v629 = vld [vmem:[#allocation12 + $0x8] sm:$0xf]
        %v630 = vld [vmem:[#allocation12 + $0xc] sm:$0xf]
        %v635 = vunpack.c.l.b16 %v627
        %v636 = vunpack.c.l.b16 %v628
        %v637 = vunpack.c.l.b16 %v629
        %v638 = vunpack.c.l.b16 %v630
        %v639 = vpack.c.b16 %v636, %v635
        %v640 = vpack.c.b16 %v638, %v637
        %vm643 = vcmask 261120
        %v645 = vsel %vm643, %v626, 0
        %647 = vmatprep.subr.bf16.mxu0 0
        %648 = vmatpush1.bf16.msra.mxu0 %v639
        %649 = vmatprep.subr.bf16.mxu0 0
        %650 = vmatpush1.bf16.msra.mxu0 %v640
        %651 = vmatprep.subr.bf16.mxu0 0
        %652 = vmatpush1.bf16.msra.mxu0 0
        %653 = vmatprep.subr.bf16.mxu0 0
        %654 = vmatpush1.bf16.msra.mxu0 0
        %655 = vmatprep.subr.bf16.mxu0 0
        %656 = vmatpush1.bf16.msra.mxu0 0
        %657 = vmatprep.subr.bf16.mxu0 0
        %658 = vmatpush1.bf16.msra.mxu0 0
        %659 = vmatprep.subr.bf16.mxu0 0
        %660 = vmatpush1.bf16.msra.mxu0 0
        %661 = vmatprep.subr.bf16.mxu0 0
        %662 = vmatpush1.bf16.msra.mxu0 0
        %663 = vmatprep.subr.bf16.mxu0 0
        %664 = vmatpush1.bf16.msra.mxu0 0
        %665 = vmatprep.subr.bf16.mxu0 0
        %666 = vmatpush1.bf16.msra.mxu0 0
        %667 = vmatprep.subr.bf16.mxu0 0
        %668 = vmatpush1.bf16.msra.mxu0 0
        %669 = vmatprep.subr.bf16.mxu0 0
        %670 = vmatpush1.bf16.msra.mxu0 0
        %671 = vmatprep.subr.bf16.mxu0 0
        %672 = vmatpush1.bf16.msra.mxu0 0
        %673 = vmatprep.subr.bf16.mxu0 0
        %674 = vmatpush1.bf16.msra.mxu0 0
        %675 = vmatprep.subr.bf16.mxu0 0
        %676 = vmatpush1.bf16.msra.mxu0 0
        %677 = vmatprep.subr.bf16.mxu0 0
        %678 = vmatpush1.bf16.msra.mxu0 0
        %679 = vmatprep.mubr.bf16.mxu0 0
        %680 = vmatmul.mubr.bf16.gmra.mrb[0].mxu0 %v645
        %v681 = vpop.f32.mrb[0].mxu0
        %v682 = vadd.f32 0.0, %v681
        %v683 = vpop.f32.mrb[0].mxu0
        %v684 = vpop.f32.mrb[0].mxu0
        %v685 = vpop.f32.mrb[0].mxu0
        %686 = vdwg.mxu0
        %s687 = scalar_lea.vmem %s420, %s621 [#allocation7]
        %v688 = vld [vmem:[%s687] sm:$0xff]
        %s689 = scalar_lea.vmem %s429, %s621 [#allocation9]
        %v690 = vld [vmem:[%s689] sm:$0xff]
        %692 = vrot.lane.b32.xlu0 %v688, 8
        %v693 = vpop.permute.xlu0 %692
        %695 = vrot.lane.b32.xlu0 %v688, 16
        %v696 = vpop.permute.xlu0 %695
        %698 = vrot.lane.b32.xlu0 %v688, 24
        %v699 = vpop.permute.xlu0 %698
        %vm701 = vcmask 64512
        %v702 = vsel %vm701, %v688, %v693
        %vm703 = vcmask 130048
        %v704 = vsel %vm703, %v702, %v696
        %vm705 = vcmask 195584
        %v706 = vsel %vm705, %v704, %v699
        %708 = vrot.lane.b32.xlu0 %v690, 8
        %v709 = vpop.permute.xlu0 %708
        %711 = vrot.lane.b32.xlu0 %v690, 16
        %v712 = vpop.permute.xlu0 %711
        %714 = vrot.lane.b32.xlu0 %v690, 24
        %v715 = vpop.permute.xlu0 %714
        %v717 = vsel %vm701, %v690, %v709
        %v718 = vsel %vm703, %v717, %v712
        %v719 = vsel %vm705, %v718, %v715
        %v720 = vmul.f32 %v682, %v706
        %722 = vrot.lane.b32.xlu0 %v719, 32
        %v723 = vpop.permute.xlu0 %722
        %v725 = vmul.f32 %v682, %v723
        %727 = vrot.lane.b32.xlu0 %v725, 96
        %v728 = vpop.permute.xlu0 %727
        %v730 = vadd.f32 %v720, %v728
        %v731 = vpack.c.bf16 %v730, %v730
        %v732 = vld [vmem:[%s438] sm:$0xf]
        %v733 = vunpack.c.l.bf16 %v732
        %v734 = vld [vmem:[#allocation15] sm:$0xf]
        %v735 = vld [vmem:[#allocation15 + $0x4] sm:$0xf]
        %v736 = vld [vmem:[#allocation15 + $0x8] sm:$0xf]
        %v737 = vld [vmem:[#allocation15 + $0xc] sm:$0xf]
        %v738 = vld [vmem:[#allocation2] sm:$0xf]
        %v739 = vld [vmem:[#allocation3] sm:$0xf]
        %v741 = vsel %vm701, %v731, 0
        %v744 = vsel %vm701, %v738, 0
        %746 = vmatprep.subr.bf16.mxu0 0
        %747 = vmatpush1.bf16.xpose.msra.mxu0 %v744
        %748 = vmatprep.subr.bf16.mxu0 0
        %749 = vmatpush1.bf16.xpose.msra.mxu0 0
        %750 = vmatprep.subr.bf16.mxu0 0
        %751 = vmatpush1.bf16.xpose.msra.mxu0 0
        %752 = vmatprep.subr.bf16.mxu0 0
        %753 = vmatpush1.bf16.xpose.msra.mxu0 0
        %754 = vmatprep.subr.bf16.mxu0 0
        %755 = vmatpush1.bf16.xpose.msra.mxu0 0
        %756 = vmatprep.subr.bf16.mxu0 0
        %757 = vmatpush1.bf16.xpose.msra.mxu0 0
        %758 = vmatprep.subr.bf16.mxu0 0
        %759 = vmatpush1.bf16.xpose.msra.mxu0 0
        %760 = vmatprep.subr.bf16.mxu0 0
        %761 = vmatpush1.bf16.xpose.msra.mxu0 0
        %762 = vmatprep.subr.bf16.mxu0 0
        %763 = vmatpush1.bf16.xpose.msra.mxu0 0
        %764 = vmatprep.subr.bf16.mxu0 0
        %765 = vmatpush1.bf16.xpose.msra.mxu0 0
        %766 = vmatprep.subr.bf16.mxu0 0
        %767 = vmatpush1.bf16.xpose.msra.mxu0 0
        %768 = vmatprep.subr.bf16.mxu0 0
        %769 = vmatpush1.bf16.xpose.msra.mxu0 0
        %770 = vmatprep.subr.bf16.mxu0 0
        %771 = vmatpush1.bf16.xpose.msra.mxu0 0
        %772 = vmatprep.subr.bf16.mxu0 0
        %773 = vmatpush1.bf16.xpose.msra.mxu0 0
        %774 = vmatprep.subr.bf16.mxu0 0
        %775 = vmatpush1.bf16.xpose.msra.mxu0 0
        %776 = vmatprep.subr.bf16.mxu0 0
        %777 = vmatpush1.bf16.xpose.msra.mxu0 0
        %778 = vmatprep.mubr.bf16.mxu0 0
        %779 = vmatmul.mubr.bf16.gmra.mrb[0].mxu0 %v741
        %v780 = vpop.f32.mrb[0].mxu0
        %v781 = vadd.f32 %v733, %v780
        %v782 = vpop.f32.mrb[0].mxu0
        %v783 = vpop.f32.mrb[0].mxu0
        %v784 = vpop.f32.mrb[0].mxu0
        %785 = vdwg.mxu0
        %v786 = vsel %vm701, %v781, -inf
        %787 = vmax.xlane.f32.xlu0 %v786
        %v788 = vpop.xlane.xlu0 %787
        %v789 = vsub.f32 %v781, %v788
        %v790 = vmul.f32 %v789, 1.442695
        %v791 = vpow.pop %v790
        %v792 = vsel %vm701, %v791, 0.0
        %793 = vadd.xlane.f32.xlu0 %v792
        %v794 = vpop.xlane.xlu0 %793
        %v795 = vrcp.pop %v794
        %v796 = vpack.c.bf16 %v791, %v791
        %v798 = vsel %vm701, %v796, 0
        %vm800 = vcmask 1043456
        %v802 = vsel %vm800, %v739, 0
        %804 = vmatprep.subr.bf16.mxu0 0
        %805 = vmatpush1.bf16.msra.mxu0 %v802
        %806 = vmatprep.subr.bf16.mxu0 0
        %807 = vmatpush1.bf16.msra.mxu0 0
        %808 = vmatprep.subr.bf16.mxu0 0
        %809 = vmatpush1.bf16.msra.mxu0 0
        %810 = vmatprep.subr.bf16.mxu0 0
        %811 = vmatpush1.bf16.msra.mxu0 0
        %812 = vmatprep.subr.bf16.mxu0 0
        %813 = vmatpush1.bf16.msra.mxu0 0
        %814 = vmatprep.subr.bf16.mxu0 0
        %815 = vmatpush1.bf16.msra.mxu0 0
        %816 = vmatprep.subr.bf16.mxu0 0
        %817 = vmatpush1.bf16.msra.mxu0 0
        %818 = vmatprep.subr.bf16.mxu0 0
        %819 = vmatpush1.bf16.msra.mxu0 0
        %820 = vmatprep.subr.bf16.mxu0 0
        %821 = vmatpush1.bf16.msra.mxu0 0
        %822 = vmatprep.subr.bf16.mxu0 0
        %823 = vmatpush1.bf16.msra.mxu0 0
        %824 = vmatprep.subr.bf16.mxu0 0
        %825 = vmatpush1.bf16.msra.mxu0 0
        %826 = vmatprep.subr.bf16.mxu0 0
        %827 = vmatpush1.bf16.msra.mxu0 0
        %828 = vmatprep.subr.bf16.mxu0 0
        %829 = vmatpush1.bf16.msra.mxu0 0
        %830 = vmatprep.subr.bf16.mxu0 0
        %831 = vmatpush1.bf16.msra.mxu0 0
        %832 = vmatprep.subr.bf16.mxu0 0
        %833 = vmatpush1.bf16.msra.mxu0 0
        %834 = vmatprep.subr.bf16.mxu0 0
        %835 = vmatpush1.bf16.msra.mxu0 0
        %836 = vmatprep.mubr.bf16.mxu0 0
        %837 = vmatmul.mubr.bf16.gmra.mrb[0].mxu0 %v798
        %v838 = vpop.f32.mrb[0].mxu0
        %v839 = vadd.f32 0.0, %v838
        %v840 = vpop.f32.mrb[0].mxu0
        %v841 = vpop.f32.mrb[0].mxu0
        %v842 = vpop.f32.mrb[0].mxu0
        %843 = vdwg.mxu0
        %v844 = vmul.f32 %v839, %v795
        %v845 = vpack.c.bf16 %v844, %v844
        %847 = vrot.lane.b32.xlu0 %v731, 120
        %v848 = vpop.permute.xlu0 %847
        %v850 = vunpack.c.l.b16 %v738
        %v851 = vpack.c.b16 %v850, %v850
        %852 = vrot.lane.b32.xlu0 %v851, 120
        %v853 = vpop.permute.xlu0 %852
        %v855 = vsel %vm701, %v848, 0
        %v858 = vsel %vm701, %v853, 0
        %860 = vmatprep.subr.bf16.mxu0 0
        %861 = vmatpush1.bf16.xpose.msra.mxu0 %v858
        %862 = vmatprep.subr.bf16.mxu0 0
        %863 = vmatpush1.bf16.xpose.msra.mxu0 0
        %864 = vmatprep.subr.bf16.mxu0 0
        %865 = vmatpush1.bf16.xpose.msra.mxu0 0
        %866 = vmatprep.subr.bf16.mxu0 0
        %867 = vmatpush1.bf16.xpose.msra.mxu0 0
        %868 = vmatprep.subr.bf16.mxu0 0
        %869 = vmatpush1.bf16.xpose.msra.mxu0 0
        %870 = vmatprep.subr.bf16.mxu0 0
        %871 = vmatpush1.bf16.xpose.msra.mxu0 0
        %872 = vmatprep.subr.bf16.mxu0 0
        %873 = vmatpush1.bf16.xpose.msra.mxu0 0
        %874 = vmatprep.subr.bf16.mxu0 0
        %875 = vmatpush1.bf16.xpose.msra.mxu0 0
        %876 = vmatprep.subr.bf16.mxu0 0
        %877 = vmatpush1.bf16.xpose.msra.mxu0 0
        %878 = vmatprep.subr.bf16.mxu0 0
        %879 = vmatpush1.bf16.xpose.msra.mxu0 0
        %880 = vmatprep.subr.bf16.mxu0 0
        %881 = vmatpush1.bf16.xpose.msra.mxu0 0
        %882 = vmatprep.subr.bf16.mxu0 0
        %883 = vmatpush1.bf16.xpose.msra.mxu0 0
        %884 = vmatprep.subr.bf16.mxu0 0
        %885 = vmatpush1.bf16.xpose.msra.mxu0 0
        %886 = vmatprep.subr.bf16.mxu0 0
        %887 = vmatpush1.bf16.xpose.msra.mxu0 0
        %888 = vmatprep.subr.bf16.mxu0 0
        %889 = vmatpush1.bf16.xpose.msra.mxu0 0
        %890 = vmatprep.subr.bf16.mxu0 0
        %891 = vmatpush1.bf16.xpose.msra.mxu0 0
        %892 = vmatprep.mubr.bf16.mxu0 0
        %893 = vmatmul.mubr.bf16.gmra.mrb[0].mxu0 %v855
        %v894 = vpop.f32.mrb[0].mxu0
        %v895 = vadd.f32 %v733, %v894
        %v896 = vpop.f32.mrb[0].mxu0
        %v897 = vpop.f32.mrb[0].mxu0
        %v898 = vpop.f32.mrb[0].mxu0
        %899 = vdwg.mxu0
        %v900 = vsel %vm701, %v895, -inf
        %901 = vmax.xlane.f32.xlu0 %v900
        %v902 = vpop.xlane.xlu0 %901
        %v903 = vsub.f32 %v895, %v902
        %v904 = vmul.f32 %v903, 1.442695
        %v905 = vpow.pop %v904
        %v906 = vsel %vm701, %v905, 0.0
        %907 = vadd.xlane.f32.xlu0 %v906
        %v908 = vpop.xlane.xlu0 %907
        %v909 = vrcp.pop %v908
        %v910 = vpack.c.bf16 %v905, %v905
        %v912 = vunpack.c.l.b16 %v739
        %v913 = vpack.c.b16 %v912, %v912
        %914 = vrot.lane.b32.xlu0 %v913, 120
        %v915 = vpop.permute.xlu0 %914
        %v917 = vsel %vm701, %v910, 0
        %v920 = vsel %vm800, %v915, 0
        %922 = vmatprep.subr.bf16.mxu0 0
        %923 = vmatpush1.bf16.msra.mxu0 %v920
        %924 = vmatprep.subr.bf16.mxu0 0
        %925 = vmatpush1.bf16.msra.mxu0 0
        %926 = vmatprep.subr.bf16.mxu0 0
        %927 = vmatpush1.bf16.msra.mxu0 0
        %928 = vmatprep.subr.bf16.mxu0 0
        %929 = vmatpush1.bf16.msra.mxu0 0
        %930 = vmatprep.subr.bf16.mxu0 0
        %931 = vmatpush1.bf16.msra.mxu0 0
        %932 = vmatprep.subr.bf16.mxu0 0
        %933 = vmatpush1.bf16.msra.mxu0 0
        %934 = vmatprep.subr.bf16.mxu0 0
        %935 = vmatpush1.bf16.msra.mxu0 0
        %936 = vmatprep.subr.bf16.mxu0 0
        %937 = vmatpush1.bf16.msra.mxu0 0
        %938 = vmatprep.subr.bf16.mxu0 0
        %939 = vmatpush1.bf16.msra.mxu0 0
        %940 = vmatprep.subr.bf16.mxu0 0
        %941 = vmatpush1.bf16.msra.mxu0 0
        %942 = vmatprep.subr.bf16.mxu0 0
        %943 = vmatpush1.bf16.msra.mxu0 0
        %944 = vmatprep.subr.bf16.mxu0 0
        %945 = vmatpush1.bf16.msra.mxu0 0
        %946 = vmatprep.subr.bf16.mxu0 0
        %947 = vmatpush1.bf16.msra.mxu0 0
        %948 = vmatprep.subr.bf16.mxu0 0
        %949 = vmatpush1.bf16.msra.mxu0 0
        %950 = vmatprep.subr.bf16.mxu0 0
        %951 = vmatpush1.bf16.msra.mxu0 0
        %952 = vmatprep.subr.bf16.mxu0 0
        %953 = vmatpush1.bf16.msra.mxu0 0
        %954 = vmatprep.mubr.bf16.mxu0 0
        %955 = vmatmul.mubr.bf16.gmra.mrb[0].mxu0 %v917
        %v956 = vpop.f32.mrb[0].mxu0
        %v957 = vadd.f32 0.0, %v956
        %v958 = vpop.f32.mrb[0].mxu0
        %v959 = vpop.f32.mrb[0].mxu0
        %v960 = vpop.f32.mrb[0].mxu0
        %961 = vdwg.mxu0
        %v962 = vmul.f32 %v957, %v909
        %v963 = vpack.c.bf16 %v962, %v962
        %v965 = vsel %vm701, %v963, 0
        %v968 = vsel %vm800, %v735, 0
        %970 = vmatprep.subr.bf16.mxu0 0
        %971 = vmatpush1.bf16.msra.mxu0 %v968
        %972 = vmatprep.subr.bf16.mxu0 0
        %973 = vmatpush1.bf16.msra.mxu0 0
        %974 = vmatprep.subr.bf16.mxu0 0
        %975 = vmatpush1.bf16.msra.mxu0 0
        %976 = vmatprep.subr.bf16.mxu0 0
        %977 = vmatpush1.bf16.msra.mxu0 0
        %978 = vmatprep.subr.bf16.mxu0 0
        %979 = vmatpush1.bf16.msra.mxu0 0
        %980 = vmatprep.subr.bf16.mxu0 0
        %981 = vmatpush1.bf16.msra.mxu0 0
        %982 = vmatprep.subr.bf16.mxu0 0
        %983 = vmatpush1.bf16.msra.mxu0 0
        %984 = vmatprep.subr.bf16.mxu0 0
        %985 = vmatpush1.bf16.msra.mxu0 0
        %986 = vmatprep.subr.bf16.mxu0 0
        %987 = vmatpush1.bf16.msra.mxu0 0
        %988 = vmatprep.subr.bf16.mxu0 0
        %989 = vmatpush1.bf16.msra.mxu0 0
        %990 = vmatprep.subr.bf16.mxu0 0
        %991 = vmatpush1.bf16.msra.mxu0 0
        %992 = vmatprep.subr.bf16.mxu0 0
        %993 = vmatpush1.bf16.msra.mxu0 0
        %994 = vmatprep.subr.bf16.mxu0 0
        %995 = vmatpush1.bf16.msra.mxu0 0
        %996 = vmatprep.subr.bf16.mxu0 0
        %997 = vmatpush1.bf16.msra.mxu0 0
        %998 = vmatprep.subr.bf16.mxu0 0
        %999 = vmatpush1.bf16.msra.mxu0 0
        %1000 = vmatprep.subr.bf16.mxu0 0
        %1001 = vmatpush1.bf16.msra.mxu0 0
        %1002 = vmatprep.mubr.bf16.mxu0 0
        %1003 = vmatmul.mubr.bf16.gmra.mrb[0].mxu0 %v965
        %v1004 = vpop.f32.mrb[0].mxu0
        %v1005 = vadd.f32 0.0, %v1004
        %v1006 = vpop.f32.mrb[0].mxu0
        %v1007 = vpop.f32.mrb[0].mxu0
        %v1008 = vpop.f32.mrb[0].mxu0
        %1009 = vdwg.mxu0
        %v1011 = vsel %vm701, %v845, 0
        %v1014 = vsel %vm800, %v734, 0
        %1016 = vmatprep.subr.bf16.mxu0 0
        %1017 = vmatpush1.bf16.msra.mxu0 %v1014
        %1018 = vmatprep.subr.bf16.mxu0 0
        %1019 = vmatpush1.bf16.msra.mxu0 0
        %1020 = vmatprep.subr.bf16.mxu0 0
        %1021 = vmatpush1.bf16.msra.mxu0 0
        %1022 = vmatprep.subr.bf16.mxu0 0
        %1023 = vmatpush1.bf16.msra.mxu0 0
        %1024 = vmatprep.subr.bf16.mxu0 0
        %1025 = vmatpush1.bf16.msra.mxu0 0
        %1026 = vmatprep.subr.bf16.mxu0 0
        %1027 = vmatpush1.bf16.msra.mxu0 0
        %1028 = vmatprep.subr.bf16.mxu0 0
        %1029 = vmatpush1.bf16.msra.mxu0 0
        %1030 = vmatprep.subr.bf16.mxu0 0
        %1031 = vmatpush1.bf16.msra.mxu0 0
        %1032 = vmatprep.subr.bf16.mxu0 0
        %1033 = vmatpush1.bf16.msra.mxu0 0
        %1034 = vmatprep.subr.bf16.mxu0 0
        %1035 = vmatpush1.bf16.msra.mxu0 0
        %1036 = vmatprep.subr.bf16.mxu0 0
        %1037 = vmatpush1.bf16.msra.mxu0 0
        %1038 = vmatprep.subr.bf16.mxu0 0
        %1039 = vmatpush1.bf16.msra.mxu0 0
        %1040 = vmatprep.subr.bf16.mxu0 0
        %1041 = vmatpush1.bf16.msra.mxu0 0
        %1042 = vmatprep.subr.bf16.mxu0 0
        %1043 = vmatpush1.bf16.msra.mxu0 0
        %1044 = vmatprep.subr.bf16.mxu0 0
        %1045 = vmatpush1.bf16.msra.mxu0 0
        %1046 = vmatprep.subr.bf16.mxu0 0
        %1047 = vmatpush1.bf16.msra.mxu0 0
        %1048 = vmatprep.mubr.bf16.mxu0 0
        %1049 = vmatmul.mubr.bf16.gmra.mrb[0].mxu0 %v1011
        %v1050 = vpop.f32.mrb[0].mxu0
        %v1051 = vadd.f32 %v1005, %v1050
        %v1052 = vpop.f32.mrb[0].mxu0
        %v1053 = vpop.f32.mrb[0].mxu0
        %v1054 = vpop.f32.mrb[0].mxu0
        %1055 = vdwg.mxu0
        %1056 = vrot.lane.b32.xlu0 %v731, 112
        %v1057 = vpop.permute.xlu0 %1056
        %1058 = vrot.lane.b32.xlu0 %v851, 112
        %v1059 = vpop.permute.xlu0 %1058
        %v1061 = vsel %vm701, %v1057, 0
        %v1064 = vsel %vm701, %v1059, 0
        %1066 = vmatprep.subr.bf16.mxu0 0
        %1067 = vmatpush1.bf16.xpose.msra.mxu0 %v1064
        %1068 = vmatprep.subr.bf16.mxu0 0
        %1069 = vmatpush1.bf16.xpose.msra.mxu0 0
        %1070 = vmatprep.subr.bf16.mxu0 0
        %1071 = vmatpush1.bf16.xpose.msra.mxu0 0
        %1072 = vmatprep.subr.bf16.mxu0 0
        %1073 = vmatpush1.bf16.xpose.msra.mxu0 0
        %1074 = vmatprep.subr.bf16.mxu0 0
        %1075 = vmatpush1.bf16.xpose.msra.mxu0 0
        %1076 = vmatprep.subr.bf16.mxu0 0
        %1077 = vmatpush1.bf16.xpose.msra.mxu0 0
        %1078 = vmatprep.subr.bf16.mxu0 0
        %1079 = vmatpush1.bf16.xpose.msra.mxu0 0
        %1080 = vmatprep.subr.bf16.mxu0 0
        %1081 = vmatpush1.bf16.xpose.msra.mxu0 0
        %1082 = vmatprep.subr.bf16.mxu0 0
        %1083 = vmatpush1.bf16.xpose.msra.mxu0 0
        %1084 = vmatprep.subr.bf16.mxu0 0
        %1085 = vmatpush1.bf16.xpose.msra.mxu0 0
        %1086 = vmatprep.subr.bf16.mxu0 0
        %1087 = vmatpush1.bf16.xpose.msra.mxu0 0
        %1088 = vmatprep.subr.bf16.mxu0 0
        %1089 = vmatpush1.bf16.xpose.msra.mxu0 0
        %1090 = vmatprep.subr.bf16.mxu0 0
        %1091 = vmatpush1.bf16.xpose.msra.mxu0 0
        %1092 = vmatprep.subr.bf16.mxu0 0
        %1093 = vmatpush1.bf16.xpose.msra.mxu0 0
        %1094 = vmatprep.subr.bf16.mxu0 0
        %1095 = vmatpush1.bf16.xpose.msra.mxu0 0
        %1096 = vmatprep.subr.bf16.mxu0 0
        %1097 = vmatpush1.bf16.xpose.msra.mxu0 0
        %1098 = vmatprep.mubr.bf16.mxu0 0
        %1099 = vmatmul.mubr.bf16.gmra.mrb[0].mxu0 %v1061
        %v1100 = vpop.f32.mrb[0].mxu0
        %v1101 = vadd.f32 %v733, %v1100
        %v1102 = vpop.f32.mrb[0].mxu0
        %v1103 = vpop.f32.mrb[0].mxu0
        %v1104 = vpop.f32.mrb[0].mxu0
        %1105 = vdwg.mxu0
        %v1106 = vsel %vm701, %v1101, -inf
        %1107 = vmax.xlane.f32.xlu0 %v1106
        %v1108 = vpop.xlane.xlu0 %1107
        %v1109 = vsub.f32 %v1101, %v1108
        %v1110 = vmul.f32 %v1109, 1.442695
        %v1111 = vpow.pop %v1110
        %v1112 = vsel %vm701, %v1111, 0.0
        %1113 = vadd.xlane.f32.xlu0 %v1112
        %v1114 = vpop.xlane.xlu0 %1113
        %v1115 = vrcp.pop %v1114
        %v1116 = vpack.c.bf16 %v1111, %v1111
        %1117 = vrot.lane.b32.xlu0 %v913, 112
        %v1118 = vpop.permute.xlu0 %1117
        %v1120 = vsel %vm701, %v1116, 0
        %v1123 = vsel %vm800, %v1118, 0
        %1125 = vmatprep.subr.bf16.mxu0 0
        %1126 = vmatpush1.bf16.msra.mxu0 %v1123
        %1127 = vmatprep.subr.bf16.mxu0 0
        %1128 = vmatpush1.bf16.msra.mxu0 0
        %1129 = vmatprep.subr.bf16.mxu0 0
        %1130 = vmatpush1.bf16.msra.mxu0 0
        %1131 = vmatprep.subr.bf16.mxu0 0
        %1132 = vmatpush1.bf16.msra.mxu0 0
        %1133 = vmatprep.subr.bf16.mxu0 0
        %1134 = vmatpush1.bf16.msra.mxu0 0
        %1135 = vmatprep.subr.bf16.mxu0 0
        %1136 = vmatpush1.bf16.msra.mxu0 0
        %1137 = vmatprep.subr.bf16.mxu0 0
        %1138 = vmatpush1.bf16.msra.mxu0 0
        %1139 = vmatprep.subr.bf16.mxu0 0
        %1140 = vmatpush1.bf16.msra.mxu0 0
        %1141 = vmatprep.subr.bf16.mxu0 0
        %1142 = vmatpush1.bf16.msra.mxu0 0
        %1143 = vmatprep.subr.bf16.mxu0 0
        %1144 = vmatpush1.bf16.msra.mxu0 0
        %1145 = vmatprep.subr.bf16.mxu0 0
        %1146 = vmatpush1.bf16.msra.mxu0 0
        %1147 = vmatprep.subr.bf16.mxu0 0
        %1148 = vmatpush1.bf16.msra.mxu0 0
        %1149 = vmatprep.subr.bf16.mxu0 0
        %1150 = vmatpush1.bf16.msra.mxu0 0
        %1151 = vmatprep.subr.bf16.mxu0 0
        %1152 = vmatpush1.bf16.msra.mxu0 0
        %1153 = vmatprep.subr.bf16.mxu0 0
        %1154 = vmatpush1.bf16.msra.mxu0 0
        %1155 = vmatprep.subr.bf16.mxu0 0
        %1156 = vmatpush1.bf16.msra.mxu0 0
        %1157 = vmatprep.mubr.bf16.mxu0 0
        %1158 = vmatmul.mubr.bf16.gmra.mrb[0].mxu0 %v1120
        %v1159 = vpop.f32.mrb[0].mxu0
        %v1160 = vadd.f32 0.0, %v1159
        %v1161 = vpop.f32.mrb[0].mxu0
        %v1162 = vpop.f32.mrb[0].mxu0
        %v1163 = vpop.f32.mrb[0].mxu0
        %1164 = vdwg.mxu0
        %v1165 = vmul.f32 %v1160, %v1115
        %v1166 = vpack.c.bf16 %v1165, %v1165
        %v1168 = vsel %vm701, %v1166, 0
        %v1171 = vsel %vm800, %v736, 0
        %1173 = vmatprep.subr.bf16.mxu0 0
        %1174 = vmatpush1.bf16.msra.mxu0 %v1171
        %1175 = vmatprep.subr.bf16.mxu0 0
        %1176 = vmatpush1.bf16.msra.mxu0 0
        %1177 = vmatprep.subr.bf16.mxu0 0
        %1178 = vmatpush1.bf16.msra.mxu0 0
        %1179 = vmatprep.subr.bf16.mxu0 0
        %1180 = vmatpush1.bf16.msra.mxu0 0
        %1181 = vmatprep.subr.bf16.mxu0 0
        %1182 = vmatpush1.bf16.msra.mxu0 0
        %1183 = vmatprep.subr.bf16.mxu0 0
        %1184 = vmatpush1.bf16.msra.mxu0 0
        %1185 = vmatprep.subr.bf16.mxu0 0
        %1186 = vmatpush1.bf16.msra.mxu0 0
        %1187 = vmatprep.subr.bf16.mxu0 0
        %1188 = vmatpush1.bf16.msra.mxu0 0
        %1189 = vmatprep.subr.bf16.mxu0 0
        %1190 = vmatpush1.bf16.msra.mxu0 0
        %1191 = vmatprep.subr.bf16.mxu0 0
        %1192 = vmatpush1.bf16.msra.mxu0 0
        %1193 = vmatprep.subr.bf16.mxu0 0
        %1194 = vmatpush1.bf16.msra.mxu0 0
        %1195 = vmatprep.subr.bf16.mxu0 0
        %1196 = vmatpush1.bf16.msra.mxu0 0
        %1197 = vmatprep.subr.bf16.mxu0 0
        %1198 = vmatpush1.bf16.msra.mxu0 0
        %1199 = vmatprep.subr.bf16.mxu0 0
        %1200 = vmatpush1.bf16.msra.mxu0 0
        %1201 = vmatprep.subr.bf16.mxu0 0
        %1202 = vmatpush1.bf16.msra.mxu0 0
        %1203 = vmatprep.subr.bf16.mxu0 0
        %1204 = vmatpush1.bf16.msra.mxu0 0
        %1205 = vmatprep.mubr.bf16.mxu0 0
        %1206 = vmatmul.mubr.bf16.gmra.mrb[0].mxu0 %v1168
        %v1207 = vpop.f32.mrb[0].mxu0
        %v1208 = vadd.f32 0.0, %v1207
        %v1209 = vpop.f32.mrb[0].mxu0
        %v1210 = vpop.f32.mrb[0].mxu0
        %v1211 = vpop.f32.mrb[0].mxu0
        %1212 = vdwg.mxu0
        %v1213 = vadd.f32 %v1051, %v1208
        %1214 = vrot.lane.b32.xlu0 %v731, 104
        %v1215 = vpop.permute.xlu0 %1214
        %1216 = vrot.lane.b32.xlu0 %v851, 104
        %v1217 = vpop.permute.xlu0 %1216
        %v1219 = vsel %vm701, %v1215, 0
        %v1222 = vsel %vm701, %v1217, 0
        %1224 = vmatprep.subr.bf16.mxu0 0
        %1225 = vmatpush1.bf16.xpose.msra.mxu0 %v1222
        %1226 = vmatprep.subr.bf16.mxu0 0
        %1227 = vmatpush1.bf16.xpose.msra.mxu0 0
        %1228 = vmatprep.subr.bf16.mxu0 0
        %1229 = vmatpush1.bf16.xpose.msra.mxu0 0
        %1230 = vmatprep.subr.bf16.mxu0 0
        %1231 = vmatpush1.bf16.xpose.msra.mxu0 0
        %1232 = vmatprep.subr.bf16.mxu0 0
        %1233 = vmatpush1.bf16.xpose.msra.mxu0 0
        %1234 = vmatprep.subr.bf16.mxu0 0
        %1235 = vmatpush1.bf16.xpose.msra.mxu0 0
        %1236 = vmatprep.subr.bf16.mxu0 0
        %1237 = vmatpush1.bf16.xpose.msra.mxu0 0
        %1238 = vmatprep.subr.bf16.mxu0 0
        %1239 = vmatpush1.bf16.xpose.msra.mxu0 0
        %1240 = vmatprep.subr.bf16.mxu0 0
        %1241 = vmatpush1.bf16.xpose.msra.mxu0 0
        %1242 = vmatprep.subr.bf16.mxu0 0
        %1243 = vmatpush1.bf16.xpose.msra.mxu0 0
        %1244 = vmatprep.subr.bf16.mxu0 0
        %1245 = vmatpush1.bf16.xpose.msra.mxu0 0
        %1246 = vmatprep.subr.bf16.mxu0 0
        %1247 = vmatpush1.bf16.xpose.msra.mxu0 0
        %1248 = vmatprep.subr.bf16.mxu0 0
        %1249 = vmatpush1.bf16.xpose.msra.mxu0 0
        %1250 = vmatprep.subr.bf16.mxu0 0
        %1251 = vmatpush1.bf16.xpose.msra.mxu0 0
        %1252 = vmatprep.subr.bf16.mxu0 0
        %1253 = vmatpush1.bf16.xpose.msra.mxu0 0
        %1254 = vmatprep.subr.bf16.mxu0 0
        %1255 = vmatpush1.bf16.xpose.msra.mxu0 0
        %1256 = vmatprep.mubr.bf16.mxu0 0
        %1257 = vmatmul.mubr.bf16.gmra.mrb[0].mxu0 %v1219
        %v1258 = vpop.f32.mrb[0].mxu0
        %v1259 = vadd.f32 %v733, %v1258
        %v1260 = vpop.f32.mrb[0].mxu0
        %v1261 = vpop.f32.mrb[0].mxu0
        %v1262 = vpop.f32.mrb[0].mxu0
        %1263 = vdwg.mxu0
        %v1264 = vsel %vm701, %v1259, -inf
        %1265 = vmax.xlane.f32.xlu0 %v1264
        %v1266 = vpop.xlane.xlu0 %1265
        %v1267 = vsub.f32 %v1259, %v1266
        %v1268 = vmul.f32 %v1267, 1.442695
        %v1269 = vpow.pop %v1268
        %v1270 = vsel %vm701, %v1269, 0.0
        %1271 = vadd.xlane.f32.xlu0 %v1270
        %v1272 = vpop.xlane.xlu0 %1271
        %v1273 = vrcp.pop %v1272
        %v1274 = vpack.c.bf16 %v1269, %v1269
        %1275 = vrot.lane.b32.xlu0 %v913, 104
        %v1276 = vpop.permute.xlu0 %1275
        %v1278 = vsel %vm701, %v1274, 0
        %v1281 = vsel %vm800, %v1276, 0
        %1283 = vmatprep.subr.bf16.mxu0 0
        %1284 = vmatpush1.bf16.msra.mxu0 %v1281
        %1285 = vmatprep.subr.bf16.mxu0 0
        %1286 = vmatpush1.bf16.msra.mxu0 0
        %1287 = vmatprep.subr.bf16.mxu0 0
        %1288 = vmatpush1.bf16.msra.mxu0 0
        %1289 = vmatprep.subr.bf16.mxu0 0
        %1290 = vmatpush1.bf16.msra.mxu0 0
        %1291 = vmatprep.subr.bf16.mxu0 0
        %1292 = vmatpush1.bf16.msra.mxu0 0
        %1293 = vmatprep.subr.bf16.mxu0 0
        %1294 = vmatpush1.bf16.msra.mxu0 0
        %1295 = vmatprep.subr.bf16.mxu0 0
        %1296 = vmatpush1.bf16.msra.mxu0 0
        %1297 = vmatprep.subr.bf16.mxu0 0
        %1298 = vmatpush1.bf16.msra.mxu0 0
        %1299 = vmatprep.subr.bf16.mxu0 0
        %1300 = vmatpush1.bf16.msra.mxu0 0
        %1301 = vmatprep.subr.bf16.mxu0 0
        %1302 = vmatpush1.bf16.msra.mxu0 0
        %1303 = vmatprep.subr.bf16.mxu0 0
        %1304 = vmatpush1.bf16.msra.mxu0 0
        %1305 = vmatprep.subr.bf16.mxu0 0
        %1306 = vmatpush1.bf16.msra.mxu0 0
        %1307 = vmatprep.subr.bf16.mxu0 0
        %1308 = vmatpush1.bf16.msra.mxu0 0
        %1309 = vmatprep.subr.bf16.mxu0 0
        %1310 = vmatpush1.bf16.msra.mxu0 0
        %1311 = vmatprep.subr.bf16.mxu0 0
        %1312 = vmatpush1.bf16.msra.mxu0 0
        %1313 = vmatprep.subr.bf16.mxu0 0
        %1314 = vmatpush1.bf16.msra.mxu0 0
        %1315 = vmatprep.mubr.bf16.mxu0 0
        %1316 = vmatmul.mubr.bf16.gmra.mrb[0].mxu0 %v1278
        %v1317 = vpop.f32.mrb[0].mxu0
        %v1318 = vadd.f32 0.0, %v1317
        %v1319 = vpop.f32.mrb[0].mxu0
        %v1320 = vpop.f32.mrb[0].mxu0
        %v1321 = vpop.f32.mrb[0].mxu0
        %1322 = vdwg.mxu0
        %v1323 = vmul.f32 %v1318, %v1273
        %v1324 = vpack.c.bf16 %v1323, %v1323
        %v1326 = vsel %vm701, %v1324, 0
        %v1329 = vsel %vm800, %v737, 0
        %1331 = vmatprep.subr.bf16.mxu0 0
        %1332 = vmatpush1.bf16.msra.mxu0 %v1329
        %1333 = vmatprep.subr.bf16.mxu0 0
        %1334 = vmatpush1.bf16.msra.mxu0 0
        %1335 = vmatprep.subr.bf16.mxu0 0
        %1336 = vmatpush1.bf16.msra.mxu0 0
        %1337 = vmatprep.subr.bf16.mxu0 0
        %1338 = vmatpush1.bf16.msra.mxu0 0
        %1339 = vmatprep.subr.bf16.mxu0 0
        %1340 = vmatpush1.bf16.msra.mxu0 0
        %1341 = vmatprep.subr.bf16.mxu0 0
        %1342 = vmatpush1.bf16.msra.mxu0 0
        %1343 = vmatprep.subr.bf16.mxu0 0
        %1344 = vmatpush1.bf16.msra.mxu0 0
        %1345 = vmatprep.subr.bf16.mxu0 0
        %1346 = vmatpush1.bf16.msra.mxu0 0
        %1347 = vmatprep.subr.bf16.mxu0 0
        %1348 = vmatpush1.bf16.msra.mxu0 0
        %1349 = vmatprep.subr.bf16.mxu0 0
        %1350 = vmatpush1.bf16.msra.mxu0 0
        %1351 = vmatprep.subr.bf16.mxu0 0
        %1352 = vmatpush1.bf16.msra.mxu0 0
        %1353 = vmatprep.subr.bf16.mxu0 0
        %1354 = vmatpush1.bf16.msra.mxu0 0
        %1355 = vmatprep.subr.bf16.mxu0 0
        %1356 = vmatpush1.bf16.msra.mxu0 0
        %1357 = vmatprep.subr.bf16.mxu0 0
        %1358 = vmatpush1.bf16.msra.mxu0 0
        %1359 = vmatprep.subr.bf16.mxu0 0
        %1360 = vmatpush1.bf16.msra.mxu0 0
        %1361 = vmatprep.subr.bf16.mxu0 0
        %1362 = vmatpush1.bf16.msra.mxu0 0
        %1363 = vmatprep.mubr.bf16.mxu0 0
        %1364 = vmatmul.mubr.bf16.gmra.mrb[0].mxu0 %v1326
        %v1365 = vpop.f32.mrb[0].mxu0
        %v1366 = vadd.f32 0.0, %v1365
        %v1367 = vpop.f32.mrb[0].mxu0
        %v1368 = vpop.f32.mrb[0].mxu0
        %v1369 = vpop.f32.mrb[0].mxu0
        %1370 = vdwg.mxu0
        %v1371 = vadd.f32 %v1213, %v1366
        %v1372 = vld [vmem:[#allocation16] sm:$0x1]
        %v1374 = vlaneseq
        %v1375 = vshrl.u32 %v1374, 7
        %v1376 = vsub.s32 0, %v1375
        %v1377 = vrot.slane %v1372, %v1376
        %v1379 = vadd.f32 %v1371, %v1377
        %1380 = vst.msk [vmem:[%s501] sm:$0xff] %vm643, %v1379
        %s1381 = sand.u32 %s245, 1
        %s1382 = scalar_lea.sflag [#allocation6], %s1381
        %s1383 = sand.u32 %s245, 1
        %s1384 = smul.addr %s1383, 8
        %s1385 = scalar_lea.vmem [#allocation18], %s1384
        // Predicated region
        $region89: #{tpu_custom_call.1} parent=51 // pred_check
          %p1386 = pneg %p255
        $region90: #{tpu_custom_call.1} parent=51 // pred_check_branch
          %1388 = sbr.rel (%p1386) target = $region92
        $region91: #{tpu_custom_call.1} parent=51 // pred_region
          %s1390 = ssub.s32 128, 128
          %1391 = vsyncadd %s1382, %s1390
          %s1392 = sadd.s32 %s38, %s37
          %s1393 = smul.addr %s1392, 128
          %s1394 = scalar_lea.hbm %s8, %s1393
          %s1396 = sshll.u32 %s1385, 4
          %s1397 = int_to_ptr.vmem [resolvable:$true] %s1396
          %1399 = dma.vmem_to_hbm [thread:$0]  %s1397, 128, %s1394, %s1382
        $region92: #{tpu_custom_call.1} parent=51 // pred_fallthru
          _
      $region52: #{tpu_custom_call.1} parent=5 // pred_fallthru
        _
      %p1400 = scmp.le.s32.totalorder 2, %s28
      // Predicated region
      $region93: #{tpu_custom_call.1} parent=5 // pred_check
        %p1401 = pneg %p1400
      $region94: #{tpu_custom_call.1} parent=5 // pred_check_branch
        %1403 = sbr.rel (%p1401) target = $region96
      $region95: #{tpu_custom_call.1} parent=5 // pred_region
        %s1404 = ssub.s32 %s28, 2
        // Predicated region
        $region97: #{tpu_custom_call.1} parent=95 // pred_check
          %p1405 = pneg %p261
        $region98: #{tpu_custom_call.1} parent=95 // pred_check_branch
          %1407 = sbr.rel (%p1405) target = $region100
        $region99: #{tpu_custom_call.1} parent=95 // pred_region
          %s1408 = sand.u32 %s246, 1
          %s1409 = scalar_lea.sflag [#allocation6], %s1408
          %s1410 = sand.u32 %s246, 1
          %s1411 = smul.addr %s1410, 8
          %s1412 = scalar_lea.vmem [#allocation18], %s1411
          %1413 = dma.done %s1409, 128
        $region100: #{tpu_custom_call.1} parent=95 // pred_fallthru
          _
      $region96: #{tpu_custom_call.1} parent=5 // pred_fallthru
        _
    $region6: #{tpu_custom_call.1} parent=1 // loop_footer
      %s32 = sadd.s32 1, %s28
    $region7: #{tpu_custom_call.1} parent=1 // loop_footer_branch
      %27 = sbr.rel target = $region3
    $region8: #{tpu_custom_call.1} parent=1 // loop_exit
      _
    %1414 = vsyncpa [#allocation5], 1
    %s1415 = scalar_lea.sflag [#allocation5], 1
    %1416 = vsyncpa %s1415, 1
    %1417 = vsyncpa [#allocation8], 1
    %s1418 = scalar_lea.sflag [#allocation8], 1
    %1419 = vsyncpa %s1418, 1
    %1420 = vsyncpa [#allocation11], 1
    %s1421 = scalar_lea.sflag [#allocation11], 1
    %1422 = vsyncpa %s1421, 1
    %1423 = vsyncpa [#allocation14], 1
    %1424 = vsyncpa [#allocation17], 1
    %1425 = vsyncpa [#allocation6], 1
    %s1426 = scalar_lea.sflag [#allocation6], 1
    %1427 = vsyncpa %s1426, 1

</llo_original>
